<compile_context>
chip_gen: v6e
topology: v6e:2x2x1
jax: 0.10.0
libtpu: 0.0.40
codegen_flags: <defaults>
</compile_context>

<pallas_src>
from types import SimpleNamespace

import jax
import jax.numpy as jnp
from jax import lax
from jax.experimental import pallas as pl
from jax.experimental.pallas import tpu as pltpu


# ---------------------------------------------------------------------------
# Fused generator kernel (single pallas_call, no grid)
# ---------------------------------------------------------------------------

def _build_generator_kernel(n_images, layer_meta):
    """Builds a Pallas kernel for the whole generator forward.

    layer_meta: list of (K, H_out) per layer. The LAST layer uses the
    row-selection matrix S (this folds in its stride); all other layers are
    stride 1 and use cheap static row slices.
    """
    n_layers = len(layer_meta)

    def kernel(x_ref, *refs):
        m_refs = refs[:n_layers]          # banded weight matrices, one per layer
        s_ref = refs[n_layers]            # row-selection matrix (final layer)
        o_ref = refs[n_layers + 1]        # output

        for n in range(n_images):                       # tiny static batch, unrolled
            act = x_ref[n]                              # (H, W) slab, Cin = 1
            for layer, (K, h_out) in enumerate(layer_meta):
                is_final = layer == n_layers - 1
                acc = None
                for kh in range(K):                     # static tap loop, unrolled
                    m_kh = m_refs[layer][kh]            # (W_in*Cin, W_out*Cout)
                    if is_final:
                        # Column taps + column stride live in m_kh; row stride
                        # is applied with the 0/1 selection matmul (avoids any
                        # in-kernel strided slice).
                        t = jnp.dot(act, m_kh, preferred_element_type=jnp.float32)
                        t = jnp.dot(s_ref[kh], t, preferred_element_type=jnp.float32)
                    else:
                        slab = act[kh:kh + h_out, :]    # (H_out, W_in*Cin)
                        t = jnp.dot(slab, m_kh, preferred_element_type=jnp.float32)
                    acc = t if acc is None else acc + t
                act = acc                               # (H_out, W_out*Cout)
            o_ref[n, :, :] = act.astype(o_ref.dtype)

    return kernel


# ---------------------------------------------------------------------------
# Wrapper-side weight preprocessing (plain XLA, runs once per forward)
# ---------------------------------------------------------------------------

def _band_weight_matrix(w_hwio, w_in, stride):
    """Fold the (kw, ci) taps of a conv layer into per-kh banded matrices.

    w_hwio: (K, K, Cin, Cout).  Returns M of shape (K, W_in*Cin, W_out*Cout):
      M[kh, wp*Cin+ci, ow*Cout+co] = w[kh, wp - stride*ow, ci, co]  (0 outside).
    """
    K, _, c_in, c_out = w_hwio.shape
    w_out = (w_in - K) // stride + 1
    wp = jnp.arange(w_in)
    ow = jnp.arange(w_out)
    kw_idx = wp[:, None] - stride * ow[None, :]              # (W_in, W_out)
    valid = (kw_idx >= 0) & (kw_idx < K)
    kw_safe = jnp.clip(kw_idx, 0, K - 1)
    taps = jnp.take(w_hwio, kw_safe, axis=1)                 # (K, W_in, W_out, Cin, Cout)
    taps = jnp.where(valid[None, :, :, None, None], taps, 0.0)
    taps = taps.transpose(0, 1, 3, 2, 4)                     # (K, W_in, Cin, W_out, Cout)
    return taps.reshape(K, w_in * c_in, w_out * c_out)


def _row_select_matrix(K, h_in, stride):
    """S[kh, i, y] = 1 iff y == stride*i + kh (picks the strided row taps)."""
    h_out = (h_in - K) // stride + 1
    i = jnp.arange(h_out)
    y = jnp.arange(h_in)
    kh = jnp.arange(K)
    return (y[None, None, :] == stride * i[None, :, None] + kh[:, None, None]
            ).astype(jnp.float32)


# ---------------------------------------------------------------------------
# Parameter init + forward (module semantics)
# ---------------------------------------------------------------------------

def init_generator_params(key, conf):
    """Deterministic weight init; shapes mirror the nn.Conv2d layers (no bias).

    Note: uses 0.1*normal for reproducibility, not PyTorch's Kaiming-uniform
    default -- only the forward-pass semantics are reproduced here.
    """
    struct = conf.G_structure
    chans_in = [1] + [conf.G_chan] * (len(struct) - 1)
    chans_out = [conf.G_chan] * (len(struct) - 1) + [1]
    keys = jax.random.split(key, len(struct))
    params = []
    for k, ks, ci, co in zip(keys, struct, chans_in, chans_out):
        params.append(0.1 * jax.random.normal(k, (ks, ks, ci, co), jnp.float32))
    return params


def generator_forward(x_nchw, params, conf):
    """Matches Generator.forward: swap_axis -> first -> features -> final -> swap_axis."""
    final_stride = int(1 / conf.scale_factor)

    x = jnp.swapaxes(x_nchw, 0, 1)             # swap_axis: (B, C, H, W) -> (C, B, H, W)
    n_img, c_in0, H, W = x.shape
    assert c_in0 == 1, "first conv layer has in_channels=1 (as in the PyTorch module)"
    x2d = x[:, 0, :, :]                        # (N, H, W) with Cin = 1

    # Fold kw/ci taps of every layer into band matrices; fold the final layer's
    # row stride into a 0/1 selection matrix.
    n_layers = len(params)
    m_mats, layer_meta = [], []
    s_mat = None
    c_out_final = params[-1].shape[-1]
    h_cur, w_cur = H, W
    for i, w_l in enumerate(params):
        K = w_l.shape[0]
        stride = final_stride if i == n_layers - 1 else 1
        m_mats.append(_band_weight_matrix(w_l, w_cur, stride))
        if i == n_layers - 1:
            s_mat = _row_select_matrix(K, h_cur, stride)
        h_cur = (h_cur - K) // stride + 1
        w_cur = (w_cur - K) // stride + 1
        layer_meta.append((K, h_cur))

    out_h, out_w = h_cur, w_cur
    kernel = _build_generator_kernel(n_img, layer_meta)

    inputs = [x2d] + m_mats + [s_mat]
    out_flat = pl.pallas_call(
        kernel,
        out_shape=jax.ShapeDtypeStruct((n_img, out_h, out_w * c_out_final), jnp.float32),
        in_specs=[pl.BlockSpec(memory_space=pltpu.MemorySpace.VMEM) for _ in inputs],
        out_specs=pl.BlockSpec(memory_space=pltpu.MemorySpace.VMEM),
    )(*inputs)

    out = out_flat.reshape(n_img, out_h, out_w, c_out_final)
    out = jnp.transpose(out, (0, 3, 1, 2))     # NHWC -> NCHW
    return jnp.swapaxes(out, 0, 1)             # swap_axis back


def generator_reference(x_nchw, params, conf):
    """Pure-XLA reference (mirrors the PyTorch module op-for-op)."""
    final_stride = int(1 / conf.scale_factor)
    x = jnp.swapaxes(x_nchw, 0, 1)
    n_layers = len(params)
    for i, w in enumerate(params):
        s = final_stride if i == n_layers - 1 else 1
        x = lax.conv_general_dilated(
            x, w, window_strides=(s, s), padding="VALID",
            dimension_numbers=("NCHW", "HWIO", "NCHW"))
    return jnp.swapaxes(x, 0, 1)


if __name__ == "__main__":
    # Small config consistent with the module (struct = kernel sizes per layer).
    conf = SimpleNamespace(G_structure=[7, 3, 1, 1], G_chan=8,
                           scale_factor=0.5, input_crop_size=26)

    key = jax.random.PRNGKey(0)
    k_param, k_x = jax.random.split(key)
    params = init_generator_params(k_param, conf)

    fwd = jax.jit(lambda xx, pp: generator_forward(xx, pp, conf))

    # Mirror Generator.__init__ bookkeeping (probe forward on ones).
    probe = jnp.ones((1, 1, conf.input_crop_size, conf.input_crop_size), jnp.float32)
    output_size = int(jax.block_until_ready(fwd(probe, params)).shape[-1])
    forward_shave = int(conf.input_crop_size * conf.scale_factor) - output_size

    # Example input: batch of 1 RGB patch; the 3 color channels become the conv
    # batch after swap_axis (the convs have in_channels=1).
    x = jax.random.normal(
        k_x, (1, 3, conf.input_crop_size, conf.input_crop_size), jnp.float32)

    out = jax.block_until_ready(fwd(x, params))
    ref = jax.block_until_ready(generator_reference(x, params, conf))

    assert out.shape == (1, 3, output_size, output_size), out.shape
    assert output_size == 9 and forward_shave == 4, (output_size, forward_shave)
    assert jnp.allclose(out, ref, rtol=2e-2, atol=2e-2), \
        float(jnp.max(jnp.abs(out - ref)))
    print("KERNEL_OK")
</pallas_src>

<mosaic_0001>
module attributes {stable_mosaic.version = 11 : i64} {
  func.func @kernel(%arg0: memref<1x26x26xf32, #tpu.memory_space<vmem>>, %arg1: memref<7x26x160xf32, #tpu.memory_space<vmem>>, %arg2: memref<3x160x144xf32, #tpu.memory_space<vmem>>, %arg3: memref<1x144x144xf32, #tpu.memory_space<vmem>>, %arg4: memref<1x144x9xf32, #tpu.memory_space<vmem>>, %arg5: memref<1x9x18xf32, #tpu.memory_space<vmem>>, %arg6: memref<1x9x9xf32, #tpu.memory_space<vmem>>) attributes {dimension_semantics = [], scalar_prefetch = 0 : i64, scratch_operands = 0 : i64, tpu.core_type = #tpu.core_type<tc>} {
    %c0 = arith.constant 0 : index
    %c0_0 = arith.constant 0 : index
    %c0_1 = arith.constant 0 : index
    %0 = vector.load %arg0[%c0, %c0_0, %c0_1] : memref<1x26x26xf32, #tpu.memory_space<vmem>>, vector<1x26x26xf32>
    %1 = vector.shape_cast %0 : vector<1x26x26xf32> to vector<26x26xf32>
    %c0_2 = arith.constant 0 : index
    %c0_3 = arith.constant 0 : index
    %c0_4 = arith.constant 0 : index
    %2 = vector.load %arg1[%c0_2, %c0_3, %c0_4] : memref<7x26x160xf32, #tpu.memory_space<vmem>>, vector<1x26x160xf32>
    %3 = vector.shape_cast %2 : vector<1x26x160xf32> to vector<26x160xf32>
    %4 = vector.extract_strided_slice %1 {offsets = [0, 0], sizes = [20, 26], strides = [1, 1]} : vector<26x26xf32> to vector<20x26xf32>
    %cst = arith.constant dense<0.000000e+00> : vector<20x160xf32>
    %5 = tpu.matmul %4, %3, %cst {dimension_numbers = #tpu.dot_dimension_numbers<[1], [0], [0], [1], [0, 0, 1, 1], [], []>} : vector<20x26xf32>, vector<26x160xf32>, vector<20x160xf32> -> vector<20x160xf32>
    %c1 = arith.constant 1 : index
    %c0_5 = arith.constant 0 : index
    %c0_6 = arith.constant 0 : index
    %6 = vector.load %arg1[%c1, %c0_5, %c0_6] : memref<7x26x160xf32, #tpu.memory_space<vmem>>, vector<1x26x160xf32>
    %7 = vector.shape_cast %6 : vector<1x26x160xf32> to vector<26x160xf32>
    %8 = vector.extract_strided_slice %1 {offsets = [1, 0], sizes = [20, 26], strides = [1, 1]} : vector<26x26xf32> to vector<20x26xf32>
    %cst_7 = arith.constant dense<0.000000e+00> : vector<20x160xf32>
    %9 = tpu.matmul %8, %7, %cst_7 {dimension_numbers = #tpu.dot_dimension_numbers<[1], [0], [0], [1], [0, 0, 1, 1], [], []>} : vector<20x26xf32>, vector<26x160xf32>, vector<20x160xf32> -> vector<20x160xf32>
    %10 = arith.addf %5, %9 : vector<20x160xf32>
    %c2 = arith.constant 2 : index
    %c0_8 = arith.constant 0 : index
    %c0_9 = arith.constant 0 : index
    %11 = vector.load %arg1[%c2, %c0_8, %c0_9] : memref<7x26x160xf32, #tpu.memory_space<vmem>>, vector<1x26x160xf32>
    %12 = vector.shape_cast %11 : vector<1x26x160xf32> to vector<26x160xf32>
    %13 = vector.extract_strided_slice %1 {offsets = [2, 0], sizes = [20, 26], strides = [1, 1]} : vector<26x26xf32> to vector<20x26xf32>
    %cst_10 = arith.constant dense<0.000000e+00> : vector<20x160xf32>
    %14 = tpu.matmul %13, %12, %cst_10 {dimension_numbers = #tpu.dot_dimension_numbers<[1], [0], [0], [1], [0, 0, 1, 1], [], []>} : vector<20x26xf32>, vector<26x160xf32>, vector<20x160xf32> -> vector<20x160xf32>
    %15 = arith.addf %10, %14 : vector<20x160xf32>
    %c3 = arith.constant 3 : index
    %c0_11 = arith.constant 0 : index
    %c0_12 = arith.constant 0 : index
    %16 = vector.load %arg1[%c3, %c0_11, %c0_12] : memref<7x26x160xf32, #tpu.memory_space<vmem>>, vector<1x26x160xf32>
    %17 = vector.shape_cast %16 : vector<1x26x160xf32> to vector<26x160xf32>
    %18 = vector.extract_strided_slice %1 {offsets = [3, 0], sizes = [20, 26], strides = [1, 1]} : vector<26x26xf32> to vector<20x26xf32>
    %cst_13 = arith.constant dense<0.000000e+00> : vector<20x160xf32>
    %19 = tpu.matmul %18, %17, %cst_13 {dimension_numbers = #tpu.dot_dimension_numbers<[1], [0], [0], [1], [0, 0, 1, 1], [], []>} : vector<20x26xf32>, vector<26x160xf32>, vector<20x160xf32> -> vector<20x160xf32>
    %20 = arith.addf %15, %19 : vector<20x160xf32>
    %c4 = arith.constant 4 : index
    %c0_14 = arith.constant 0 : index
    %c0_15 = arith.constant 0 : index
    %21 = vector.load %arg1[%c4, %c0_14, %c0_15] : memref<7x26x160xf32, #tpu.memory_space<vmem>>, vector<1x26x160xf32>
    %22 = vector.shape_cast %21 : vector<1x26x160xf32> to vector<26x160xf32>
    %23 = vector.extract_strided_slice %1 {offsets = [4, 0], sizes = [20, 26], strides = [1, 1]} : vector<26x26xf32> to vector<20x26xf32>
    %cst_16 = arith.constant dense<0.000000e+00> : vector<20x160xf32>
    %24 = tpu.matmul %23, %22, %cst_16 {dimension_numbers = #tpu.dot_dimension_numbers<[1], [0], [0], [1], [0, 0, 1, 1], [], []>} : vector<20x26xf32>, vector<26x160xf32>, vector<20x160xf32> -> vector<20x160xf32>
    %25 = arith.addf %20, %24 : vector<20x160xf32>
    %c5 = arith.constant 5 : index
    %c0_17 = arith.constant 0 : index
    %c0_18 = arith.constant 0 : index
    %26 = vector.load %arg1[%c5, %c0_17, %c0_18] : memref<7x26x160xf32, #tpu.memory_space<vmem>>, vector<1x26x160xf32>
    %27 = vector.shape_cast %26 : vector<1x26x160xf32> to vector<26x160xf32>
    %28 = vector.extract_strided_slice %1 {offsets = [5, 0], sizes = [20, 26], strides = [1, 1]} : vector<26x26xf32> to vector<20x26xf32>
    %cst_19 = arith.constant dense<0.000000e+00> : vector<20x160xf32>
    %29 = tpu.matmul %28, %27, %cst_19 {dimension_numbers = #tpu.dot_dimension_numbers<[1], [0], [0], [1], [0, 0, 1, 1], [], []>} : vector<20x26xf32>, vector<26x160xf32>, vector<20x160xf32> -> vector<20x160xf32>
    %30 = arith.addf %25, %29 : vector<20x160xf32>
    %c6 = arith.constant 6 : index
    %c0_20 = arith.constant 0 : index
    %c0_21 = arith.constant 0 : index
    %31 = vector.load %arg1[%c6, %c0_20, %c0_21] : memref<7x26x160xf32, #tpu.memory_space<vmem>>, vector<1x26x160xf32>
    %32 = vector.shape_cast %31 : vector<1x26x160xf32> to vector<26x160xf32>
    %33 = vector.extract_strided_slice %1 {offsets = [6, 0], sizes = [20, 26], strides = [1, 1]} : vector<26x26xf32> to vector<20x26xf32>
    %cst_22 = arith.constant dense<0.000000e+00> : vector<20x160xf32>
    %34 = tpu.matmul %33, %32, %cst_22 {dimension_numbers = #tpu.dot_dimension_numbers<[1], [0], [0], [1], [0, 0, 1, 1], [], []>} : vector<20x26xf32>, vector<26x160xf32>, vector<20x160xf32> -> vector<20x160xf32>
    %35 = arith.addf %30, %34 : vector<20x160xf32>
    %c0_23 = arith.constant 0 : index
    %c0_24 = arith.constant 0 : index
    %c0_25 = arith.constant 0 : index
    %36 = vector.load %arg2[%c0_23, %c0_24, %c0_25] : memref<3x160x144xf32, #tpu.memory_space<vmem>>, vector<1x160x144xf32>
    %37 = vector.shape_cast %36 : vector<1x160x144xf32> to vector<160x144xf32>
    %38 = vector.extract_strided_slice %35 {offsets = [0, 0], sizes = [18, 160], strides = [1, 1]} : vector<20x160xf32> to vector<18x160xf32>
    %cst_26 = arith.constant dense<0.000000e+00> : vector<18x144xf32>
    %39 = tpu.matmul %38, %37, %cst_26 {dimension_numbers = #tpu.dot_dimension_numbers<[1], [0], [0], [1], [0, 0, 1, 1], [], []>} : vector<18x160xf32>, vector<160x144xf32>, vector<18x144xf32> -> vector<18x144xf32>
    %c1_27 = arith.constant 1 : index
    %c0_28 = arith.constant 0 : index
    %c0_29 = arith.constant 0 : index
    %40 = vector.load %arg2[%c1_27, %c0_28, %c0_29] : memref<3x160x144xf32, #tpu.memory_space<vmem>>, vector<1x160x144xf32>
    %41 = vector.shape_cast %40 : vector<1x160x144xf32> to vector<160x144xf32>
    %42 = vector.extract_strided_slice %35 {offsets = [1, 0], sizes = [18, 160], strides = [1, 1]} : vector<20x160xf32> to vector<18x160xf32>
    %cst_30 = arith.constant dense<0.000000e+00> : vector<18x144xf32>
    %43 = tpu.matmul %42, %41, %cst_30 {dimension_numbers = #tpu.dot_dimension_numbers<[1], [0], [0], [1], [0, 0, 1, 1], [], []>} : vector<18x160xf32>, vector<160x144xf32>, vector<18x144xf32> -> vector<18x144xf32>
    %44 = arith.addf %39, %43 : vector<18x144xf32>
    %c2_31 = arith.constant 2 : index
    %c0_32 = arith.constant 0 : index
    %c0_33 = arith.constant 0 : index
    %45 = vector.load %arg2[%c2_31, %c0_32, %c0_33] : memref<3x160x144xf32, #tpu.memory_space<vmem>>, vector<1x160x144xf32>
    %46 = vector.shape_cast %45 : vector<1x160x144xf32> to vector<160x144xf32>
    %47 = vector.extract_strided_slice %35 {offsets = [2, 0], sizes = [18, 160], strides = [1, 1]} : vector<20x160xf32> to vector<18x160xf32>
    %cst_34 = arith.constant dense<0.000000e+00> : vector<18x144xf32>
    %48 = tpu.matmul %47, %46, %cst_34 {dimension_numbers = #tpu.dot_dimension_numbers<[1], [0], [0], [1], [0, 0, 1, 1], [], []>} : vector<18x160xf32>, vector<160x144xf32>, vector<18x144xf32> -> vector<18x144xf32>
    %49 = arith.addf %44, %48 : vector<18x144xf32>
    %c0_35 = arith.constant 0 : index
    %c0_36 = arith.constant 0 : index
    %c0_37 = arith.constant 0 : index
    %50 = vector.load %arg3[%c0_35, %c0_36, %c0_37] : memref<1x144x144xf32, #tpu.memory_space<vmem>>, vector<1x144x144xf32>
    %51 = vector.shape_cast %50 : vector<1x144x144xf32> to vector<144x144xf32>
    %cst_38 = arith.constant dense<0.000000e+00> : vector<18x144xf32>
    %52 = tpu.matmul %49, %51, %cst_38 {dimension_numbers = #tpu.dot_dimension_numbers<[1], [0], [0], [1], [0, 0, 1, 1], [], []>} : vector<18x144xf32>, vector<144x144xf32>, vector<18x144xf32> -> vector<18x144xf32>
    %c0_39 = arith.constant 0 : index
    %c0_40 = arith.constant 0 : index
    %c0_41 = arith.constant 0 : index
    %53 = vector.load %arg4[%c0_39, %c0_40, %c0_41] : memref<1x144x9xf32, #tpu.memory_space<vmem>>, vector<1x144x9xf32>
    %54 = vector.shape_cast %53 : vector<1x144x9xf32> to vector<144x9xf32>
    %cst_42 = arith.constant dense<0.000000e+00> : vector<18x9xf32>
    %55 = tpu.matmul %52, %54, %cst_42 {dimension_numbers = #tpu.dot_dimension_numbers<[1], [0], [0], [1], [0, 0, 1, 1], [], []>} : vector<18x144xf32>, vector<144x9xf32>, vector<18x9xf32> -> vector<18x9xf32>
    %c0_43 = arith.constant 0 : index
    %c0_44 = arith.constant 0 : index
    %c0_45 = arith.constant 0 : index
    %56 = vector.load %arg5[%c0_43, %c0_44, %c0_45] : memref<1x9x18xf32, #tpu.memory_space<vmem>>, vector<1x9x18xf32>
    %57 = vector.shape_cast %56 : vector<1x9x18xf32> to vector<9x18xf32>
    %cst_46 = arith.constant dense<0.000000e+00> : vector<9x9xf32>
    %58 = tpu.matmul %57, %55, %cst_46 {dimension_numbers = #tpu.dot_dimension_numbers<[1], [0], [0], [1], [0, 0, 1, 1], [], []>} : vector<9x18xf32>, vector<18x9xf32>, vector<9x9xf32> -> vector<9x9xf32>
    %c0_47 = arith.constant 0 : index
    %c0_48 = arith.constant 0 : index
    %c0_49 = arith.constant 0 : index
    %59 = vector.load %arg6[%c0_47, %c0_48, %c0_49] : memref<1x9x9xf32, #tpu.memory_space<vmem>>, vector<1x9x9xf32>
    %60 = vector.shape_cast %59 : vector<1x9x9xf32> to vector<9x9xf32>
    %61 = vector.shape_cast %58 : vector<9x9xf32> to vector<1x9x9xf32>
    tpu.vector_store %arg6[%c0_47, %c0_48, %c0_49], %61 {strides = array<i32>} : memref<1x9x9xf32, #tpu.memory_space<vmem>>, vector<1x9x9xf32>,
    return
  }
}

</mosaic_0001>

<llo_original>
// kernel: _lambda_.1
$region0: #{_lambda_.1}
  #allocation0 [shape = 'u32[]', space=smem, size = 0x4, offset = 0x4, fixed_abs, tag = 'smem constant byte address 0x4 - core index']
  #allocation1 [shape = 'u32[144,128]{1,0:T(1,128)}', space=vmem, size = 0x12000, scoped, tag = 'internal scratch']
  %s0 = inlined_call_operand.vmem [shape: f32[1,26,26], index: 0, kind: input, shape index: {}]
  %s1 = inlined_call_operand.vmem [shape: f32[7,26,160], index: 1, kind: input, shape index: {}]
  %s2 = inlined_call_operand.vmem [shape: f32[3,160,144], index: 2, kind: input, shape index: {}]
  %s3 = inlined_call_operand.vmem [shape: f32[1,144,144], index: 3, kind: input, shape index: {}]
  %s4 = inlined_call_operand.vmem [shape: f32[1,144,9], index: 4, kind: input, shape index: {}]
  %s5 = inlined_call_operand.vmem [shape: f32[1,9,18], index: 5, kind: input, shape index: {}]
  %s6 = inlined_call_operand.vmem [shape: f32[1,9,9], index: 6, kind: output, shape index: {}]
  %s7 = sld [smem:[#allocation0]]
  $region34: #{_lambda_.1} parent=0
    _
  %s9 = ssub.s32 1, %s7
  %s10 = scalar_select 0, %s9, %s7
  // Predicated region
  $region2: #{_lambda_.1} parent=0 // pred_check
    _
  $region3: #{_lambda_.1} parent=0 // pred_check_branch
    %12 = sbr.rel (0) target = $region5
  $region4: #{_lambda_.1} parent=0 // pred_region
    _
  $region5: #{_lambda_.1} parent=0 // pred_fallthru
    _
  // Predicated region
  $region6: #{_lambda_.1} parent=0 // pred_check
    _
  $region7: #{_lambda_.1} parent=0 // pred_check_branch
    %14 = sbr.rel (0) target = $region9
  $region8: #{_lambda_.1} parent=0 // pred_region
    _
  $region9: #{_lambda_.1} parent=0 // pred_fallthru
    _
  // Predicated region
  $region10: #{_lambda_.1} parent=0 // pred_check
    _
  $region11: #{_lambda_.1} parent=0 // pred_check_branch
    %16 = sbr.rel (0) target = $region13
  $region12: #{_lambda_.1} parent=0 // pred_region
    _
  $region13: #{_lambda_.1} parent=0 // pred_fallthru
    _
  // Predicated region
  $region14: #{_lambda_.1} parent=0 // pred_check
    _
  $region15: #{_lambda_.1} parent=0 // pred_check_branch
    %18 = sbr.rel (0) target = $region17
  $region16: #{_lambda_.1} parent=0 // pred_region
    _
  $region17: #{_lambda_.1} parent=0 // pred_fallthru
    _
  // Predicated region
  $region18: #{_lambda_.1} parent=0 // pred_check
    _
  $region19: #{_lambda_.1} parent=0 // pred_check_branch
    %20 = sbr.rel (0) target = $region21
  $region20: #{_lambda_.1} parent=0 // pred_region
    _
  $region21: #{_lambda_.1} parent=0 // pred_fallthru
    _
  // Predicated region
  $region22: #{_lambda_.1} parent=0 // pred_check
    _
  $region23: #{_lambda_.1} parent=0 // pred_check_branch
    %22 = sbr.rel (0) target = $region25
  $region24: #{_lambda_.1} parent=0 // pred_region
    _
  $region25: #{_lambda_.1} parent=0 // pred_fallthru
    _
  %v23 = vld [vmem:[%s0] sm:$0xff]
  %v24 = vld [vmem:[%s0 + $0x8] sm:$0xff]
  %v25 = vld [vmem:[%s0 + $0x10] sm:$0xff]
  %v26 = vld [vmem:[%s0 + $0x18] sm:$0x3]
  %v27 = vld [vmem:[%s1] sm:$0xff]
  %v28 = vld [vmem:[%s1 + $0x8] sm:$0xff]
  %v29 = vld [vmem:[%s1 + $0x10] sm:$0xff]
  %v30 = vld [vmem:[%s1 + $0x18] sm:$0xff]
  %v31 = vld [vmem:[%s1 + $0x20] sm:$0xff]
  %v32 = vld [vmem:[%s1 + $0x28] sm:$0xff]
  %v33 = vld [vmem:[%s1 + $0x30] sm:$0x3]
  %v34 = vld [vmem:[%s1 + $0x38] sm:$0x3]
  %s35 = scalar_lea.vmem %s1, 64
  %v36 = vld [vmem:[%s35] sm:$0xff]
  %v37 = vld [vmem:[%s35 + $0x8] sm:$0xff]
  %v38 = vld [vmem:[%s35 + $0x10] sm:$0xff]
  %v39 = vld [vmem:[%s35 + $0x18] sm:$0xff]
  %v40 = vld [vmem:[%s35 + $0x20] sm:$0xff]
  %v41 = vld [vmem:[%s35 + $0x28] sm:$0xff]
  %v42 = vld [vmem:[%s35 + $0x30] sm:$0x3]
  %v43 = vld [vmem:[%s35 + $0x38] sm:$0x3]
  %vm47 = vcmask 1046528
  %v48 = vrot.slane %v23, 1
  %v49 = vrot.slane %v24, 1
  %v50 = vsel %vm47, %v48, %v49
  %v51 = vrot.slane %v25, 1
  %v52 = vsel %vm47, %v49, %v51
  %vm53 = vcmask 211968
  %v54 = vsel %vm53, %v50, 0
  %v56 = vsel %vm53, %v52, 0
  %v58 = vsel %vm53, %v51, 0
  %vm60 = vcmask 1041408
  %v62 = vsel %vm60, %v42, 0
  %v65 = vsel %vm60, %v43, 0
  %67 = vmatprep.subr.mxu0 0.0
  %68 = vmatpush1.msra.mxu0 0.0
  %69 = vmatprep.subr.mxu0 0.0
  %70 = vmatpush1.msra.mxu0 0.0
  %71 = vmatprep.subr.mxu0 0.0
  %72 = vmatpush1.msra.mxu0 0.0
  %73 = vmatprep.subr.mxu0 0.0
  %74 = vmatpush1.msra.mxu0 0.0
  %75 = vmatprep.subr.mxu0 0.0
  %76 = vmatpush1.msra.mxu0 0.0
  %77 = vmatprep.subr.mxu0 0.0
  %78 = vmatpush1.msra.mxu0 0.0
  %79 = vmatprep.subr.mxu0 0.0
  %80 = vmatpush1.msra.mxu0 0.0
  %81 = vmatprep.subr.mxu0 0.0
  %82 = vmatpush1.msra.mxu0 0.0
  %83 = vmatprep.subr.mxu0 0.0
  %84 = vmatpush1.msra.mxu0 0.0
  %85 = vmatprep.subr.mxu0 0.0
  %86 = vmatpush1.msra.mxu0 0.0
  %87 = vmatprep.subr.mxu0 0.0
  %88 = vmatpush1.msra.mxu0 0.0
  %89 = vmatprep.subr.mxu0 0.0
  %90 = vmatpush1.msra.mxu0 0.0
  %91 = vmatprep.subr.mxu0 %v65
  %92 = vmatpush1.msra.mxu0 %v62
  %93 = vmatprep.subr.mxu0 %v41
  %94 = vmatpush1.msra.mxu0 %v40
  %95 = vmatprep.subr.mxu0 %v39
  %96 = vmatpush1.msra.mxu0 %v38
  %97 = vmatprep.subr.mxu0 %v37
  %98 = vmatpush1.msra.mxu0 %v36
  %99 = vmatprep.subr.mxu0 0.0
  %100 = vmatpush2.msra.mxu0 0.0
  %101 = vmatprep.subr.mxu0 0.0
  %102 = vmatpush2.msra.mxu0 0.0
  %103 = vmatprep.subr.mxu0 0.0
  %104 = vmatpush2.msra.mxu0 0.0
  %105 = vmatprep.subr.mxu0 0.0
  %106 = vmatpush2.msra.mxu0 0.0
  %107 = vmatprep.subr.mxu0 0.0
  %108 = vmatpush2.msra.mxu0 0.0
  %109 = vmatprep.subr.mxu0 0.0
  %110 = vmatpush2.msra.mxu0 0.0
  %111 = vmatprep.subr.mxu0 0.0
  %112 = vmatpush2.msra.mxu0 0.0
  %113 = vmatprep.subr.mxu0 0.0
  %114 = vmatpush2.msra.mxu0 0.0
  %115 = vmatprep.subr.mxu0 0.0
  %116 = vmatpush2.msra.mxu0 0.0
  %117 = vmatprep.subr.mxu0 0.0
  %118 = vmatpush2.msra.mxu0 0.0
  %119 = vmatprep.subr.mxu0 0.0
  %120 = vmatpush2.msra.mxu0 0.0
  %121 = vmatprep.subr.mxu0 0.0
  %122 = vmatpush2.msra.mxu0 0.0
  %123 = vmatprep.subr.mxu0 0.0
  %124 = vmatpush2.msra.mxu0 0.0
  %125 = vmatprep.subr.mxu0 0.0
  %126 = vmatpush2.msra.mxu0 0.0
  %127 = vmatprep.subr.mxu0 0.0
  %128 = vmatpush2.msra.mxu0 0.0
  %129 = vmatprep.subr.mxu0 0.0
  %130 = vmatpush2.msra.mxu0 0.0
  %131 = vmatprep.mubr.f32.mxu0 0.0
  %132 = vmatmul.mubr.f32.gmra.mxu0 %v54
  %v133 = vpop.f32.mrf.mxu0
  %v134 = vadd.f32 0.0, %v133
  %v135 = vpop.f32.mrf.mxu0
  %v136 = vadd.f32 0.0, %v135
  %137 = vmatprep.mubr.f32.mxu0 0.0
  %138 = vmatmul.mubr.f32.gmra.mxu0 %v56
  %v139 = vpop.f32.mrf.mxu0
  %v140 = vadd.f32 0.0, %v139
  %v141 = vpop.f32.mrf.mxu0
  %v142 = vadd.f32 0.0, %v141
  %143 = vmatprep.mubr.f32.mxu0 0.0
  %144 = vmatmul.mubr.f32.gmra.mxu0 %v58
  %v145 = vpop.f32.mrf.mxu0
  %v146 = vadd.f32 0.0, %v145
  %v147 = vpop.f32.mrf.mxu0
  %v148 = vadd.f32 0.0, %v147
  %149 = vdwg.mxu0
  %v150 = vsel %vm53, %v23, 0
  %v152 = vsel %vm53, %v24, 0
  %v154 = vsel %vm53, %v25, 0
  %v157 = vsel %vm60, %v33, 0
  %v160 = vsel %vm60, %v34, 0
  %162 = vmatprep.subr.mxu0 0.0
  %163 = vmatpush1.msra.mxu0 0.0
  %164 = vmatprep.subr.mxu0 0.0
  %165 = vmatpush1.msra.mxu0 0.0
  %166 = vmatprep.subr.mxu0 0.0
  %167 = vmatpush1.msra.mxu0 0.0
  %168 = vmatprep.subr.mxu0 0.0
  %169 = vmatpush1.msra.mxu0 0.0
  %170 = vmatprep.subr.mxu0 0.0
  %171 = vmatpush1.msra.mxu0 0.0
  %172 = vmatprep.subr.mxu0 0.0
  %173 = vmatpush1.msra.mxu0 0.0
  %174 = vmatprep.subr.mxu0 0.0
  %175 = vmatpush1.msra.mxu0 0.0
  %176 = vmatprep.subr.mxu0 0.0
  %177 = vmatpush1.msra.mxu0 0.0
  %178 = vmatprep.subr.mxu0 0.0
  %179 = vmatpush1.msra.mxu0 0.0
  %180 = vmatprep.subr.mxu0 0.0
  %181 = vmatpush1.msra.mxu0 0.0
  %182 = vmatprep.subr.mxu0 0.0
  %183 = vmatpush1.msra.mxu0 0.0
  %184 = vmatprep.subr.mxu0 0.0
  %185 = vmatpush1.msra.mxu0 0.0
  %186 = vmatprep.subr.mxu0 %v160
  %187 = vmatpush1.msra.mxu0 %v157
  %188 = vmatprep.subr.mxu0 %v32
  %189 = vmatpush1.msra.mxu0 %v31
  %190 = vmatprep.subr.mxu0 %v30
  %191 = vmatpush1.msra.mxu0 %v29
  %192 = vmatprep.subr.mxu0 %v28
  %193 = vmatpush1.msra.mxu0 %v27
  %194 = vmatprep.subr.mxu0 0.0
  %195 = vmatpush2.msra.mxu0 0.0
  %196 = vmatprep.subr.mxu0 0.0
  %197 = vmatpush2.msra.mxu0 0.0
  %198 = vmatprep.subr.mxu0 0.0
  %199 = vmatpush2.msra.mxu0 0.0
  %200 = vmatprep.subr.mxu0 0.0
  %201 = vmatpush2.msra.mxu0 0.0
  %202 = vmatprep.subr.mxu0 0.0
  %203 = vmatpush2.msra.mxu0 0.0
  %204 = vmatprep.subr.mxu0 0.0
  %205 = vmatpush2.msra.mxu0 0.0
  %206 = vmatprep.subr.mxu0 0.0
  %207 = vmatpush2.msra.mxu0 0.0
  %208 = vmatprep.subr.mxu0 0.0
  %209 = vmatpush2.msra.mxu0 0.0
  %210 = vmatprep.subr.mxu0 0.0
  %211 = vmatpush2.msra.mxu0 0.0
  %212 = vmatprep.subr.mxu0 0.0
  %213 = vmatpush2.msra.mxu0 0.0
  %214 = vmatprep.subr.mxu0 0.0
  %215 = vmatpush2.msra.mxu0 0.0
  %216 = vmatprep.subr.mxu0 0.0
  %217 = vmatpush2.msra.mxu0 0.0
  %218 = vmatprep.subr.mxu0 0.0
  %219 = vmatpush2.msra.mxu0 0.0
  %220 = vmatprep.subr.mxu0 0.0
  %221 = vmatpush2.msra.mxu0 0.0
  %222 = vmatprep.subr.mxu0 0.0
  %223 = vmatpush2.msra.mxu0 0.0
  %224 = vmatprep.subr.mxu0 0.0
  %225 = vmatpush2.msra.mxu0 0.0
  %226 = vmatprep.mubr.f32.mxu0 0.0
  %227 = vmatmul.mubr.f32.gmra.mxu0 %v150
  %v228 = vpop.f32.mrf.mxu0
  %v229 = vadd.f32 %v134, %v228
  %v230 = vpop.f32.mrf.mxu0
  %v231 = vadd.f32 %v136, %v230
  %232 = vmatprep.mubr.f32.mxu0 0.0
  %233 = vmatmul.mubr.f32.gmra.mxu0 %v152
  %v234 = vpop.f32.mrf.mxu0
  %v235 = vadd.f32 %v140, %v234
  %v236 = vpop.f32.mrf.mxu0
  %v237 = vadd.f32 %v142, %v236
  %238 = vmatprep.mubr.f32.mxu0 0.0
  %239 = vmatmul.mubr.f32.gmra.mxu0 %v154
  %v240 = vpop.f32.mrf.mxu0
  %v241 = vadd.f32 %v146, %v240
  %v242 = vpop.f32.mrf.mxu0
  %v243 = vadd.f32 %v148, %v242
  %244 = vdwg.mxu0
  %s245 = scalar_lea.vmem %s1, 128
  %v246 = vld [vmem:[%s245] sm:$0xff]
  %v247 = vld [vmem:[%s245 + $0x8] sm:$0xff]
  %v248 = vld [vmem:[%s245 + $0x10] sm:$0xff]
  %v249 = vld [vmem:[%s245 + $0x18] sm:$0xff]
  %v250 = vld [vmem:[%s245 + $0x20] sm:$0xff]
  %v251 = vld [vmem:[%s245 + $0x28] sm:$0xff]
  %v252 = vld [vmem:[%s245 + $0x30] sm:$0x3]
  %v253 = vld [vmem:[%s245 + $0x38] sm:$0x3]
  %vm254 = vcmask 1045504
  %v255 = vrot.slane %v23, 2
  %v256 = vrot.slane %v24, 2
  %v257 = vsel %vm254, %v255, %v256
  %v258 = vrot.slane %v25, 2
  %v259 = vsel %vm254, %v256, %v258
  %v260 = vsel %vm53, %v257, 0
  %v262 = vsel %vm53, %v259, 0
  %v264 = vsel %vm53, %v258, 0
  %v267 = vsel %vm60, %v252, 0
  %v270 = vsel %vm60, %v253, 0
  %272 = vmatprep.subr.mxu0 0.0
  %273 = vmatpush1.msra.mxu0 0.0
  %274 = vmatprep.subr.mxu0 0.0
  %275 = vmatpush1.msra.mxu0 0.0
  %276 = vmatprep.subr.mxu0 0.0
  %277 = vmatpush1.msra.mxu0 0.0
  %278 = vmatprep.subr.mxu0 0.0
  %279 = vmatpush1.msra.mxu0 0.0
  %280 = vmatprep.subr.mxu0 0.0
  %281 = vmatpush1.msra.mxu0 0.0
  %282 = vmatprep.subr.mxu0 0.0
  %283 = vmatpush1.msra.mxu0 0.0
  %284 = vmatprep.subr.mxu0 0.0
  %285 = vmatpush1.msra.mxu0 0.0
  %286 = vmatprep.subr.mxu0 0.0
  %287 = vmatpush1.msra.mxu0 0.0
  %288 = vmatprep.subr.mxu0 0.0
  %289 = vmatpush1.msra.mxu0 0.0
  %290 = vmatprep.subr.mxu0 0.0
  %291 = vmatpush1.msra.mxu0 0.0
  %292 = vmatprep.subr.mxu0 0.0
  %293 = vmatpush1.msra.mxu0 0.0
  %294 = vmatprep.subr.mxu0 0.0
  %295 = vmatpush1.msra.mxu0 0.0
  %296 = vmatprep.subr.mxu0 %v270
  %297 = vmatpush1.msra.mxu0 %v267
  %298 = vmatprep.subr.mxu0 %v251
  %299 = vmatpush1.msra.mxu0 %v250
  %300 = vmatprep.subr.mxu0 %v249
  %301 = vmatpush1.msra.mxu0 %v248
  %302 = vmatprep.subr.mxu0 %v247
  %303 = vmatpush1.msra.mxu0 %v246
  %304 = vmatprep.subr.mxu0 0.0
  %305 = vmatpush2.msra.mxu0 0.0
  %306 = vmatprep.subr.mxu0 0.0
  %307 = vmatpush2.msra.mxu0 0.0
  %308 = vmatprep.subr.mxu0 0.0
  %309 = vmatpush2.msra.mxu0 0.0
  %310 = vmatprep.subr.mxu0 0.0
  %311 = vmatpush2.msra.mxu0 0.0
  %312 = vmatprep.subr.mxu0 0.0
  %313 = vmatpush2.msra.mxu0 0.0
  %314 = vmatprep.subr.mxu0 0.0
  %315 = vmatpush2.msra.mxu0 0.0
  %316 = vmatprep.subr.mxu0 0.0
  %317 = vmatpush2.msra.mxu0 0.0
  %318 = vmatprep.subr.mxu0 0.0
  %319 = vmatpush2.msra.mxu0 0.0
  %320 = vmatprep.subr.mxu0 0.0
  %321 = vmatpush2.msra.mxu0 0.0
  %322 = vmatprep.subr.mxu0 0.0
  %323 = vmatpush2.msra.mxu0 0.0
  %324 = vmatprep.subr.mxu0 0.0
  %325 = vmatpush2.msra.mxu0 0.0
  %326 = vmatprep.subr.mxu0 0.0
  %327 = vmatpush2.msra.mxu0 0.0
  %328 = vmatprep.subr.mxu0 0.0
  %329 = vmatpush2.msra.mxu0 0.0
  %330 = vmatprep.subr.mxu0 0.0
  %331 = vmatpush2.msra.mxu0 0.0
  %332 = vmatprep.subr.mxu0 0.0
  %333 = vmatpush2.msra.mxu0 0.0
  %334 = vmatprep.subr.mxu0 0.0
  %335 = vmatpush2.msra.mxu0 0.0
  %336 = vmatprep.mubr.f32.mxu0 0.0
  %337 = vmatmul.mubr.f32.gmra.mxu0 %v260
  %v338 = vpop.f32.mrf.mxu0
  %v339 = vadd.f32 0.0, %v338
  %v340 = vpop.f32.mrf.mxu0
  %v341 = vadd.f32 0.0, %v340
  %342 = vmatprep.mubr.f32.mxu0 0.0
  %343 = vmatmul.mubr.f32.gmra.mxu0 %v262
  %v344 = vpop.f32.mrf.mxu0
  %v345 = vadd.f32 0.0, %v344
  %v346 = vpop.f32.mrf.mxu0
  %v347 = vadd.f32 0.0, %v346
  %348 = vmatprep.mubr.f32.mxu0 0.0
  %349 = vmatmul.mubr.f32.gmra.mxu0 %v264
  %v350 = vpop.f32.mrf.mxu0
  %v351 = vadd.f32 0.0, %v350
  %v352 = vpop.f32.mrf.mxu0
  %v353 = vadd.f32 0.0, %v352
  %354 = vdwg.mxu0
  %v355 = vadd.f32 %v229, %v339
  %v356 = vadd.f32 %v231, %v341
  %v357 = vadd.f32 %v235, %v345
  %v358 = vadd.f32 %v237, %v347
  %v359 = vadd.f32 %v241, %v351
  %v360 = vadd.f32 %v243, %v353
  %s361 = scalar_lea.vmem %s1, 192
  %v362 = vld [vmem:[%s361] sm:$0xff]
  %v363 = vld [vmem:[%s361 + $0x8] sm:$0xff]
  %v364 = vld [vmem:[%s361 + $0x10] sm:$0xff]
  %v365 = vld [vmem:[%s361 + $0x18] sm:$0xff]
  %v366 = vld [vmem:[%s361 + $0x20] sm:$0xff]
  %v367 = vld [vmem:[%s361 + $0x28] sm:$0xff]
  %v368 = vld [vmem:[%s361 + $0x30] sm:$0x3]
  %v369 = vld [vmem:[%s361 + $0x38] sm:$0x3]
  %vm370 = vcmask 1044480
  %v371 = vrot.slane %v23, 3
  %v372 = vrot.slane %v24, 3
  %v373 = vsel %vm370, %v371, %v372
  %v374 = vrot.slane %v25, 3
  %v375 = vsel %vm370, %v372, %v374
  %v376 = vsel %vm53, %v373, 0
  %v378 = vsel %vm53, %v375, 0
  %v380 = vsel %vm53, %v374, 0
  %v383 = vsel %vm60, %v368, 0
  %v386 = vsel %vm60, %v369, 0
  %388 = vmatprep.subr.mxu0 0.0
  %389 = vmatpush1.msra.mxu0 0.0
  %390 = vmatprep.subr.mxu0 0.0
  %391 = vmatpush1.msra.mxu0 0.0
  %392 = vmatprep.subr.mxu0 0.0
  %393 = vmatpush1.msra.mxu0 0.0
  %394 = vmatprep.subr.mxu0 0.0
  %395 = vmatpush1.msra.mxu0 0.0
  %396 = vmatprep.subr.mxu0 0.0
  %397 = vmatpush1.msra.mxu0 0.0
  %398 = vmatprep.subr.mxu0 0.0
  %399 = vmatpush1.msra.mxu0 0.0
  %400 = vmatprep.subr.mxu0 0.0
  %401 = vmatpush1.msra.mxu0 0.0
  %402 = vmatprep.subr.mxu0 0.0
  %403 = vmatpush1.msra.mxu0 0.0
  %404 = vmatprep.subr.mxu0 0.0
  %405 = vmatpush1.msra.mxu0 0.0
  %406 = vmatprep.subr.mxu0 0.0
  %407 = vmatpush1.msra.mxu0 0.0
  %408 = vmatprep.subr.mxu0 0.0
  %409 = vmatpush1.msra.mxu0 0.0
  %410 = vmatprep.subr.mxu0 0.0
  %411 = vmatpush1.msra.mxu0 0.0
  %412 = vmatprep.subr.mxu0 %v386
  %413 = vmatpush1.msra.mxu0 %v383
  %414 = vmatprep.subr.mxu0 %v367
  %415 = vmatpush1.msra.mxu0 %v366
  %416 = vmatprep.subr.mxu0 %v365
  %417 = vmatpush1.msra.mxu0 %v364
  %418 = vmatprep.subr.mxu0 %v363
  %419 = vmatpush1.msra.mxu0 %v362
  %420 = vmatprep.subr.mxu0 0.0
  %421 = vmatpush2.msra.mxu0 0.0
  %422 = vmatprep.subr.mxu0 0.0
  %423 = vmatpush2.msra.mxu0 0.0
  %424 = vmatprep.subr.mxu0 0.0
  %425 = vmatpush2.msra.mxu0 0.0
  %426 = vmatprep.subr.mxu0 0.0
  %427 = vmatpush2.msra.mxu0 0.0
  %428 = vmatprep.subr.mxu0 0.0
  %429 = vmatpush2.msra.mxu0 0.0
  %430 = vmatprep.subr.mxu0 0.0
  %431 = vmatpush2.msra.mxu0 0.0
  %432 = vmatprep.subr.mxu0 0.0
  %433 = vmatpush2.msra.mxu0 0.0
  %434 = vmatprep.subr.mxu0 0.0
  %435 = vmatpush2.msra.mxu0 0.0
  %436 = vmatprep.subr.mxu0 0.0
  %437 = vmatpush2.msra.mxu0 0.0
  %438 = vmatprep.subr.mxu0 0.0
  %439 = vmatpush2.msra.mxu0 0.0
  %440 = vmatprep.subr.mxu0 0.0
  %441 = vmatpush2.msra.mxu0 0.0
  %442 = vmatprep.subr.mxu0 0.0
  %443 = vmatpush2.msra.mxu0 0.0
  %444 = vmatprep.subr.mxu0 0.0
  %445 = vmatpush2.msra.mxu0 0.0
  %446 = vmatprep.subr.mxu0 0.0
  %447 = vmatpush2.msra.mxu0 0.0
  %448 = vmatprep.subr.mxu0 0.0
  %449 = vmatpush2.msra.mxu0 0.0
  %450 = vmatprep.subr.mxu0 0.0
  %451 = vmatpush2.msra.mxu0 0.0
  %452 = vmatprep.mubr.f32.mxu0 0.0
  %453 = vmatmul.mubr.f32.gmra.mxu0 %v376
  %v454 = vpop.f32.mrf.mxu0
  %v455 = vadd.f32 0.0, %v454
  %v456 = vpop.f32.mrf.mxu0
  %v457 = vadd.f32 0.0, %v456
  %458 = vmatprep.mubr.f32.mxu0 0.0
  %459 = vmatmul.mubr.f32.gmra.mxu0 %v378
  %v460 = vpop.f32.mrf.mxu0
  %v461 = vadd.f32 0.0, %v460
  %v462 = vpop.f32.mrf.mxu0
  %v463 = vadd.f32 0.0, %v462
  %464 = vmatprep.mubr.f32.mxu0 0.0
  %465 = vmatmul.mubr.f32.gmra.mxu0 %v380
  %v466 = vpop.f32.mrf.mxu0
  %v467 = vadd.f32 0.0, %v466
  %v468 = vpop.f32.mrf.mxu0
  %v469 = vadd.f32 0.0, %v468
  %470 = vdwg.mxu0
  %v471 = vadd.f32 %v355, %v455
  %v472 = vadd.f32 %v356, %v457
  %v473 = vadd.f32 %v357, %v461
  %v474 = vadd.f32 %v358, %v463
  %v475 = vadd.f32 %v359, %v467
  %v476 = vadd.f32 %v360, %v469
  %s477 = scalar_lea.vmem %s1, 256
  %v478 = vld [vmem:[%s477] sm:$0xff]
  %v479 = vld [vmem:[%s477 + $0x8] sm:$0xff]
  %v480 = vld [vmem:[%s477 + $0x10] sm:$0xff]
  %v481 = vld [vmem:[%s477 + $0x18] sm:$0xff]
  %v482 = vld [vmem:[%s477 + $0x20] sm:$0xff]
  %v483 = vld [vmem:[%s477 + $0x28] sm:$0xff]
  %v484 = vld [vmem:[%s477 + $0x30] sm:$0x3]
  %v485 = vld [vmem:[%s477 + $0x38] sm:$0x3]
  %vm486 = vcmask 1043456
  %v487 = vrot.slane %v23, 4
  %v488 = vrot.slane %v24, 4
  %v489 = vsel %vm486, %v487, %v488
  %v490 = vrot.slane %v25, 4
  %v491 = vsel %vm486, %v488, %v490
  %v492 = vsel %vm53, %v489, 0
  %v494 = vsel %vm53, %v491, 0
  %v496 = vsel %vm53, %v490, 0
  %v499 = vsel %vm60, %v484, 0
  %v502 = vsel %vm60, %v485, 0
  %504 = vmatprep.subr.mxu0 0.0
  %505 = vmatpush1.msra.mxu0 0.0
  %506 = vmatprep.subr.mxu0 0.0
  %507 = vmatpush1.msra.mxu0 0.0
  %508 = vmatprep.subr.mxu0 0.0
  %509 = vmatpush1.msra.mxu0 0.0
  %510 = vmatprep.subr.mxu0 0.0
  %511 = vmatpush1.msra.mxu0 0.0
  %512 = vmatprep.subr.mxu0 0.0
  %513 = vmatpush1.msra.mxu0 0.0
  %514 = vmatprep.subr.mxu0 0.0
  %515 = vmatpush1.msra.mxu0 0.0
  %516 = vmatprep.subr.mxu0 0.0
  %517 = vmatpush1.msra.mxu0 0.0
  %518 = vmatprep.subr.mxu0 0.0
  %519 = vmatpush1.msra.mxu0 0.0
  %520 = vmatprep.subr.mxu0 0.0
  %521 = vmatpush1.msra.mxu0 0.0
  %522 = vmatprep.subr.mxu0 0.0
  %523 = vmatpush1.msra.mxu0 0.0
  %524 = vmatprep.subr.mxu0 0.0
  %525 = vmatpush1.msra.mxu0 0.0
  %526 = vmatprep.subr.mxu0 0.0
  %527 = vmatpush1.msra.mxu0 0.0
  %528 = vmatprep.subr.mxu0 %v502
  %529 = vmatpush1.msra.mxu0 %v499
  %530 = vmatprep.subr.mxu0 %v483
  %531 = vmatpush1.msra.mxu0 %v482
  %532 = vmatprep.subr.mxu0 %v481
  %533 = vmatpush1.msra.mxu0 %v480
  %534 = vmatprep.subr.mxu0 %v479
  %535 = vmatpush1.msra.mxu0 %v478
  %536 = vmatprep.subr.mxu0 0.0
  %537 = vmatpush2.msra.mxu0 0.0
  %538 = vmatprep.subr.mxu0 0.0
  %539 = vmatpush2.msra.mxu0 0.0
  %540 = vmatprep.subr.mxu0 0.0
  %541 = vmatpush2.msra.mxu0 0.0
  %542 = vmatprep.subr.mxu0 0.0
  %543 = vmatpush2.msra.mxu0 0.0
  %544 = vmatprep.subr.mxu0 0.0
  %545 = vmatpush2.msra.mxu0 0.0
  %546 = vmatprep.subr.mxu0 0.0
  %547 = vmatpush2.msra.mxu0 0.0
  %548 = vmatprep.subr.mxu0 0.0
  %549 = vmatpush2.msra.mxu0 0.0
  %550 = vmatprep.subr.mxu0 0.0
  %551 = vmatpush2.msra.mxu0 0.0
  %552 = vmatprep.subr.mxu0 0.0
  %553 = vmatpush2.msra.mxu0 0.0
  %554 = vmatprep.subr.mxu0 0.0
  %555 = vmatpush2.msra.mxu0 0.0
  %556 = vmatprep.subr.mxu0 0.0
  %557 = vmatpush2.msra.mxu0 0.0
  %558 = vmatprep.subr.mxu0 0.0
  %559 = vmatpush2.msra.mxu0 0.0
  %560 = vmatprep.subr.mxu0 0.0
  %561 = vmatpush2.msra.mxu0 0.0
  %562 = vmatprep.subr.mxu0 0.0
  %563 = vmatpush2.msra.mxu0 0.0
  %564 = vmatprep.subr.mxu0 0.0
  %565 = vmatpush2.msra.mxu0 0.0
  %566 = vmatprep.subr.mxu0 0.0
  %567 = vmatpush2.msra.mxu0 0.0
  %568 = vmatprep.mubr.f32.mxu0 0.0
  %569 = vmatmul.mubr.f32.gmra.mxu0 %v492
  %v570 = vpop.f32.mrf.mxu0
  %v571 = vadd.f32 0.0, %v570
  %v572 = vpop.f32.mrf.mxu0
  %v573 = vadd.f32 0.0, %v572
  %574 = vmatprep.mubr.f32.mxu0 0.0
  %575 = vmatmul.mubr.f32.gmra.mxu0 %v494
  %v576 = vpop.f32.mrf.mxu0
  %v577 = vadd.f32 0.0, %v576
  %v578 = vpop.f32.mrf.mxu0
  %v579 = vadd.f32 0.0, %v578
  %580 = vmatprep.mubr.f32.mxu0 0.0
  %581 = vmatmul.mubr.f32.gmra.mxu0 %v496
  %v582 = vpop.f32.mrf.mxu0
  %v583 = vadd.f32 0.0, %v582
  %v584 = vpop.f32.mrf.mxu0
  %v585 = vadd.f32 0.0, %v584
  %586 = vdwg.mxu0
  %v587 = vadd.f32 %v471, %v571
  %v588 = vadd.f32 %v472, %v573
  %v589 = vadd.f32 %v473, %v577
  %v590 = vadd.f32 %v474, %v579
  %v591 = vadd.f32 %v475, %v583
  %v592 = vadd.f32 %v476, %v585
  %s593 = scalar_lea.vmem %s1, 320
  %v594 = vld [vmem:[%s593] sm:$0xff]
  %v595 = vld [vmem:[%s593 + $0x8] sm:$0xff]
  %v596 = vld [vmem:[%s593 + $0x10] sm:$0xff]
  %v597 = vld [vmem:[%s593 + $0x18] sm:$0xff]
  %v598 = vld [vmem:[%s593 + $0x20] sm:$0xff]
  %v599 = vld [vmem:[%s593 + $0x28] sm:$0xff]
  %v600 = vld [vmem:[%s593 + $0x30] sm:$0x3]
  %v601 = vld [vmem:[%s593 + $0x38] sm:$0x3]
  %vm603 = vcmask 1042432
  %v604 = vrot.slane %v23, 5
  %v605 = vrot.slane %v24, 5
  %v606 = vsel %vm603, %v604, %v605
  %v607 = vrot.slane %v25, 5
  %v608 = vsel %vm603, %v605, %v607
  %v609 = vrot.slane %v26, 5
  %v610 = vsel %vm603, %v607, %v609
  %v611 = vsel %vm53, %v606, 0
  %v613 = vsel %vm53, %v608, 0
  %v615 = vsel %vm53, %v610, 0
  %v618 = vsel %vm60, %v600, 0
  %v621 = vsel %vm60, %v601, 0
  %623 = vmatprep.subr.mxu0 0.0
  %624 = vmatpush1.msra.mxu0 0.0
  %625 = vmatprep.subr.mxu0 0.0
  %626 = vmatpush1.msra.mxu0 0.0
  %627 = vmatprep.subr.mxu0 0.0
  %628 = vmatpush1.msra.mxu0 0.0
  %629 = vmatprep.subr.mxu0 0.0
  %630 = vmatpush1.msra.mxu0 0.0
  %631 = vmatprep.subr.mxu0 0.0
  %632 = vmatpush1.msra.mxu0 0.0
  %633 = vmatprep.subr.mxu0 0.0
  %634 = vmatpush1.msra.mxu0 0.0
  %635 = vmatprep.subr.mxu0 0.0
  %636 = vmatpush1.msra.mxu0 0.0
  %637 = vmatprep.subr.mxu0 0.0
  %638 = vmatpush1.msra.mxu0 0.0
  %639 = vmatprep.subr.mxu0 0.0
  %640 = vmatpush1.msra.mxu0 0.0
  %641 = vmatprep.subr.mxu0 0.0
  %642 = vmatpush1.msra.mxu0 0.0
  %643 = vmatprep.subr.mxu0 0.0
  %644 = vmatpush1.msra.mxu0 0.0
  %645 = vmatprep.subr.mxu0 0.0
  %646 = vmatpush1.msra.mxu0 0.0
  %647 = vmatprep.subr.mxu0 %v621
  %648 = vmatpush1.msra.mxu0 %v618
  %649 = vmatprep.subr.mxu0 %v599
  %650 = vmatpush1.msra.mxu0 %v598
  %651 = vmatprep.subr.mxu0 %v597
  %652 = vmatpush1.msra.mxu0 %v596
  %653 = vmatprep.subr.mxu0 %v595
  %654 = vmatpush1.msra.mxu0 %v594
  %655 = vmatprep.subr.mxu0 0.0
  %656 = vmatpush2.msra.mxu0 0.0
  %657 = vmatprep.subr.mxu0 0.0
  %658 = vmatpush2.msra.mxu0 0.0
  %659 = vmatprep.subr.mxu0 0.0
  %660 = vmatpush2.msra.mxu0 0.0
  %661 = vmatprep.subr.mxu0 0.0
  %662 = vmatpush2.msra.mxu0 0.0
  %663 = vmatprep.subr.mxu0 0.0
  %664 = vmatpush2.msra.mxu0 0.0
  %665 = vmatprep.subr.mxu0 0.0
  %666 = vmatpush2.msra.mxu0 0.0
  %667 = vmatprep.subr.mxu0 0.0
  %668 = vmatpush2.msra.mxu0 0.0
  %669 = vmatprep.subr.mxu0 0.0
  %670 = vmatpush2.msra.mxu0 0.0
  %671 = vmatprep.subr.mxu0 0.0
  %672 = vmatpush2.msra.mxu0 0.0
  %673 = vmatprep.subr.mxu0 0.0
  %674 = vmatpush2.msra.mxu0 0.0
  %675 = vmatprep.subr.mxu0 0.0
  %676 = vmatpush2.msra.mxu0 0.0
  %677 = vmatprep.subr.mxu0 0.0
  %678 = vmatpush2.msra.mxu0 0.0
  %679 = vmatprep.subr.mxu0 0.0
  %680 = vmatpush2.msra.mxu0 0.0
  %681 = vmatprep.subr.mxu0 0.0
  %682 = vmatpush2.msra.mxu0 0.0
  %683 = vmatprep.subr.mxu0 0.0
  %684 = vmatpush2.msra.mxu0 0.0
  %685 = vmatprep.subr.mxu0 0.0
  %686 = vmatpush2.msra.mxu0 0.0
  %687 = vmatprep.mubr.f32.mxu0 0.0
  %688 = vmatmul.mubr.f32.gmra.mxu0 %v611
  %v689 = vpop.f32.mrf.mxu0
  %v690 = vadd.f32 0.0, %v689
  %v691 = vpop.f32.mrf.mxu0
  %v692 = vadd.f32 0.0, %v691
  %693 = vmatprep.mubr.f32.mxu0 0.0
  %694 = vmatmul.mubr.f32.gmra.mxu0 %v613
  %v695 = vpop.f32.mrf.mxu0
  %v696 = vadd.f32 0.0, %v695
  %v697 = vpop.f32.mrf.mxu0
  %v698 = vadd.f32 0.0, %v697
  %699 = vmatprep.mubr.f32.mxu0 0.0
  %700 = vmatmul.mubr.f32.gmra.mxu0 %v615
  %v701 = vpop.f32.mrf.mxu0
  %v702 = vadd.f32 0.0, %v701
  %v703 = vpop.f32.mrf.mxu0
  %v704 = vadd.f32 0.0, %v703
  %705 = vdwg.mxu0
  %v706 = vadd.f32 %v587, %v690
  %v707 = vadd.f32 %v588, %v692
  %v708 = vadd.f32 %v589, %v696
  %v709 = vadd.f32 %v590, %v698
  %v710 = vadd.f32 %v591, %v702
  %v711 = vadd.f32 %v592, %v704
  %s712 = scalar_lea.vmem %s1, 384
  %v713 = vld [vmem:[%s712] sm:$0xff]
  %v714 = vld [vmem:[%s712 + $0x8] sm:$0xff]
  %v715 = vld [vmem:[%s712 + $0x10] sm:$0xff]
  %v716 = vld [vmem:[%s712 + $0x18] sm:$0xff]
  %v717 = vld [vmem:[%s712 + $0x20] sm:$0xff]
  %v718 = vld [vmem:[%s712 + $0x28] sm:$0xff]
  %v719 = vld [vmem:[%s712 + $0x30] sm:$0x3]
  %v720 = vld [vmem:[%s712 + $0x38] sm:$0x3]
  %v721 = vrot.slane %v23, 6
  %v722 = vrot.slane %v24, 6
  %v723 = vsel %vm60, %v721, %v722
  %v724 = vrot.slane %v25, 6
  %v725 = vsel %vm60, %v722, %v724
  %v726 = vrot.slane %v26, 6
  %v727 = vsel %vm60, %v724, %v726
  %v728 = vsel %vm53, %v723, 0
  %v730 = vsel %vm53, %v725, 0
  %v732 = vsel %vm53, %v727, 0
  %v735 = vsel %vm60, %v719, 0
  %v738 = vsel %vm60, %v720, 0
  %740 = vmatprep.subr.mxu0 0.0
  %741 = vmatpush1.msra.mxu0 0.0
  %742 = vmatprep.subr.mxu0 0.0
  %743 = vmatpush1.msra.mxu0 0.0
  %744 = vmatprep.subr.mxu0 0.0
  %745 = vmatpush1.msra.mxu0 0.0
  %746 = vmatprep.subr.mxu0 0.0
  %747 = vmatpush1.msra.mxu0 0.0
  %748 = vmatprep.subr.mxu0 0.0
  %749 = vmatpush1.msra.mxu0 0.0
  %750 = vmatprep.subr.mxu0 0.0
  %751 = vmatpush1.msra.mxu0 0.0
  %752 = vmatprep.subr.mxu0 0.0
  %753 = vmatpush1.msra.mxu0 0.0
  %754 = vmatprep.subr.mxu0 0.0
  %755 = vmatpush1.msra.mxu0 0.0
  %756 = vmatprep.subr.mxu0 0.0
  %757 = vmatpush1.msra.mxu0 0.0
  %758 = vmatprep.subr.mxu0 0.0
  %759 = vmatpush1.msra.mxu0 0.0
  %760 = vmatprep.subr.mxu0 0.0
  %761 = vmatpush1.msra.mxu0 0.0
  %762 = vmatprep.subr.mxu0 0.0
  %763 = vmatpush1.msra.mxu0 0.0
  %764 = vmatprep.subr.mxu0 %v738
  %765 = vmatpush1.msra.mxu0 %v735
  %766 = vmatprep.subr.mxu0 %v718
  %767 = vmatpush1.msra.mxu0 %v717
  %768 = vmatprep.subr.mxu0 %v716
  %769 = vmatpush1.msra.mxu0 %v715
  %770 = vmatprep.subr.mxu0 %v714
  %771 = vmatpush1.msra.mxu0 %v713
  %772 = vmatprep.subr.mxu0 0.0
  %773 = vmatpush2.msra.mxu0 0.0
  %774 = vmatprep.subr.mxu0 0.0
  %775 = vmatpush2.msra.mxu0 0.0
  %776 = vmatprep.subr.mxu0 0.0
  %777 = vmatpush2.msra.mxu0 0.0
  %778 = vmatprep.subr.mxu0 0.0
  %779 = vmatpush2.msra.mxu0 0.0
  %780 = vmatprep.subr.mxu0 0.0
  %781 = vmatpush2.msra.mxu0 0.0
  %782 = vmatprep.subr.mxu0 0.0
  %783 = vmatpush2.msra.mxu0 0.0
  %784 = vmatprep.subr.mxu0 0.0
  %785 = vmatpush2.msra.mxu0 0.0
  %786 = vmatprep.subr.mxu0 0.0
  %787 = vmatpush2.msra.mxu0 0.0
  %788 = vmatprep.subr.mxu0 0.0
  %789 = vmatpush2.msra.mxu0 0.0
  %790 = vmatprep.subr.mxu0 0.0
  %791 = vmatpush2.msra.mxu0 0.0
  %792 = vmatprep.subr.mxu0 0.0
  %793 = vmatpush2.msra.mxu0 0.0
  %794 = vmatprep.subr.mxu0 0.0
  %795 = vmatpush2.msra.mxu0 0.0
  %796 = vmatprep.subr.mxu0 0.0
  %797 = vmatpush2.msra.mxu0 0.0
  %798 = vmatprep.subr.mxu0 0.0
  %799 = vmatpush2.msra.mxu0 0.0
  %800 = vmatprep.subr.mxu0 0.0
  %801 = vmatpush2.msra.mxu0 0.0
  %802 = vmatprep.subr.mxu0 0.0
  %803 = vmatpush2.msra.mxu0 0.0
  %804 = vmatprep.mubr.f32.mxu0 0.0
  %805 = vmatmul.mubr.f32.gmra.mxu0 %v728
  %v806 = vpop.f32.mrf.mxu0
  %v807 = vadd.f32 0.0, %v806
  %v808 = vpop.f32.mrf.mxu0
  %v809 = vadd.f32 0.0, %v808
  %810 = vmatprep.mubr.f32.mxu0 0.0
  %811 = vmatmul.mubr.f32.gmra.mxu0 %v730
  %v812 = vpop.f32.mrf.mxu0
  %v813 = vadd.f32 0.0, %v812
  %v814 = vpop.f32.mrf.mxu0
  %v815 = vadd.f32 0.0, %v814
  %816 = vmatprep.mubr.f32.mxu0 0.0
  %817 = vmatmul.mubr.f32.gmra.mxu0 %v732
  %v818 = vpop.f32.mrf.mxu0
  %v819 = vadd.f32 0.0, %v818
  %v820 = vpop.f32.mrf.mxu0
  %v821 = vadd.f32 0.0, %v820
  %822 = vdwg.mxu0
  %v823 = vadd.f32 %v706, %v807
  %v824 = vadd.f32 %v707, %v809
  %v825 = vadd.f32 %v708, %v813
  %v826 = vadd.f32 %v709, %v815
  %v827 = vadd.f32 %v710, %v819
  %v828 = vadd.f32 %v711, %v821
  %v829 = vld [vmem:[%s2] sm:$0xff]
  %v830 = vld [vmem:[%s2 + $0x8] sm:$0xff]
  %v831 = vld [vmem:[%s2 + $0x10] sm:$0xff]
  %v832 = vld [vmem:[%s2 + $0x18] sm:$0xff]
  %v833 = vld [vmem:[%s2 + $0x20] sm:$0xff]
  %v834 = vld [vmem:[%s2 + $0x28] sm:$0xff]
  %v835 = vld [vmem:[%s2 + $0x30] sm:$0xff]
  %v836 = vld [vmem:[%s2 + $0x38] sm:$0xff]
  %v837 = vld [vmem:[%s2 + $0x40] sm:$0xff]
  %v838 = vld [vmem:[%s2 + $0x48] sm:$0xff]
  %v839 = vld [vmem:[%s2 + $0x50] sm:$0xff]
  %v840 = vld [vmem:[%s2 + $0x58] sm:$0xff]
  %v841 = vld [vmem:[%s2 + $0x60] sm:$0xff]
  %v842 = vld [vmem:[%s2 + $0x68] sm:$0xff]
  %v843 = vld [vmem:[%s2 + $0x70] sm:$0xff]
  %v844 = vld [vmem:[%s2 + $0x78] sm:$0xff]
  %v845 = vld [vmem:[%s2 + $0x80] sm:$0xff]
  %v846 = vld [vmem:[%s2 + $0x88] sm:$0xff]
  %v847 = vld [vmem:[%s2 + $0x90] sm:$0xff]
  %v848 = vld [vmem:[%s2 + $0x98] sm:$0xff]
  %v849 = vld [vmem:[%s2 + $0xa0] sm:$0xff]
  %v850 = vld [vmem:[%s2 + $0xa8] sm:$0xff]
  %v851 = vld [vmem:[%s2 + $0xb0] sm:$0xff]
  %v852 = vld [vmem:[%s2 + $0xb8] sm:$0xff]
  %v853 = vld [vmem:[%s2 + $0xc0] sm:$0xff]
  %v854 = vld [vmem:[%s2 + $0xc8] sm:$0xff]
  %v855 = vld [vmem:[%s2 + $0xd0] sm:$0xff]
  %v856 = vld [vmem:[%s2 + $0xd8] sm:$0xff]
  %v857 = vld [vmem:[%s2 + $0xe0] sm:$0xff]
  %v858 = vld [vmem:[%s2 + $0xe8] sm:$0xff]
  %v859 = vld [vmem:[%s2 + $0xf0] sm:$0xff]
  %v860 = vld [vmem:[%s2 + $0xf8] sm:$0xff]
  %v861 = vld [vmem:[%s2 + $0x100] sm:$0xff]
  %v862 = vld [vmem:[%s2 + $0x108] sm:$0xff]
  %v863 = vld [vmem:[%s2 + $0x110] sm:$0xff]
  %v864 = vld [vmem:[%s2 + $0x118] sm:$0xff]
  %v865 = vld [vmem:[%s2 + $0x120] sm:$0xff]
  %v866 = vld [vmem:[%s2 + $0x128] sm:$0xff]
  %v867 = vld [vmem:[%s2 + $0x130] sm:$0xff]
  %v868 = vld [vmem:[%s2 + $0x138] sm:$0xff]
  %s869 = scalar_lea.vmem %s2, 320
  %v870 = vld [vmem:[%s869] sm:$0xff]
  %v871 = vld [vmem:[%s869 + $0x8] sm:$0xff]
  %v872 = vld [vmem:[%s869 + $0x10] sm:$0xff]
  %v873 = vld [vmem:[%s869 + $0x18] sm:$0xff]
  %v874 = vld [vmem:[%s869 + $0x20] sm:$0xff]
  %v875 = vld [vmem:[%s869 + $0x28] sm:$0xff]
  %v876 = vld [vmem:[%s869 + $0x30] sm:$0xff]
  %v877 = vld [vmem:[%s869 + $0x38] sm:$0xff]
  %v878 = vld [vmem:[%s869 + $0x40] sm:$0xff]
  %v879 = vld [vmem:[%s869 + $0x48] sm:$0xff]
  %v880 = vld [vmem:[%s869 + $0x50] sm:$0xff]
  %v881 = vld [vmem:[%s869 + $0x58] sm:$0xff]
  %v882 = vld [vmem:[%s869 + $0x60] sm:$0xff]
  %v883 = vld [vmem:[%s869 + $0x68] sm:$0xff]
  %v884 = vld [vmem:[%s869 + $0x70] sm:$0xff]
  %v885 = vld [vmem:[%s869 + $0x78] sm:$0xff]
  %v886 = vld [vmem:[%s869 + $0x80] sm:$0xff]
  %v887 = vld [vmem:[%s869 + $0x88] sm:$0xff]
  %v888 = vld [vmem:[%s869 + $0x90] sm:$0xff]
  %v889 = vld [vmem:[%s869 + $0x98] sm:$0xff]
  %v890 = vld [vmem:[%s869 + $0xa0] sm:$0xff]
  %v891 = vld [vmem:[%s869 + $0xa8] sm:$0xff]
  %v892 = vld [vmem:[%s869 + $0xb0] sm:$0xff]
  %v893 = vld [vmem:[%s869 + $0xb8] sm:$0xff]
  %v894 = vld [vmem:[%s869 + $0xc0] sm:$0xff]
  %v895 = vld [vmem:[%s869 + $0xc8] sm:$0xff]
  %v896 = vld [vmem:[%s869 + $0xd0] sm:$0xff]
  %v897 = vld [vmem:[%s869 + $0xd8] sm:$0xff]
  %v898 = vld [vmem:[%s869 + $0xe0] sm:$0xff]
  %v899 = vld [vmem:[%s869 + $0xe8] sm:$0xff]
  %v900 = vld [vmem:[%s869 + $0xf0] sm:$0xff]
  %v901 = vld [vmem:[%s869 + $0xf8] sm:$0xff]
  %v902 = vld [vmem:[%s869 + $0x100] sm:$0xff]
  %v903 = vld [vmem:[%s869 + $0x108] sm:$0xff]
  %v904 = vld [vmem:[%s869 + $0x110] sm:$0xff]
  %v905 = vld [vmem:[%s869 + $0x118] sm:$0xff]
  %v906 = vld [vmem:[%s869 + $0x120] sm:$0xff]
  %v907 = vld [vmem:[%s869 + $0x128] sm:$0xff]
  %v908 = vld [vmem:[%s869 + $0x130] sm:$0xff]
  %v909 = vld [vmem:[%s869 + $0x138] sm:$0xff]
  %v916 = vrot.slane %v823, 1
  %v917 = vrot.slane %v825, 1
  %v918 = vsel %vm47, %v916, %v917
  %v919 = vrot.slane %v824, 1
  %v920 = vrot.slane %v826, 1
  %v921 = vsel %vm47, %v919, %v920
  %v922 = vrot.slane %v827, 1
  %v923 = vsel %vm47, %v917, %v922
  %v924 = vrot.slane %v828, 1
  %v925 = vsel %vm47, %v920, %v924
  %vm929 = vcmask 261120
  %v930 = vsel %vm929, %v921, 0
  %v932 = vsel %vm929, %v925, 0
  %v934 = vsel %vm929, %v924, 0
  %936 = vmatprep.subr.mxu0 %v901
  %937 = vmatpush1.msra.mxu0 %v900
  %938 = vmatprep.subr.mxu0 %v899
  %939 = vmatpush1.msra.mxu0 %v898
  %940 = vmatprep.subr.mxu0 %v897
  %941 = vmatpush1.msra.mxu0 %v896
  %942 = vmatprep.subr.mxu0 %v895
  %943 = vmatpush1.msra.mxu0 %v894
  %944 = vmatprep.subr.mxu0 %v893
  %945 = vmatpush1.msra.mxu0 %v892
  %946 = vmatprep.subr.mxu0 %v891
  %947 = vmatpush1.msra.mxu0 %v890
  %948 = vmatprep.subr.mxu0 %v889
  %949 = vmatpush1.msra.mxu0 %v888
  %950 = vmatprep.subr.mxu0 %v887
  %951 = vmatpush1.msra.mxu0 %v886
  %952 = vmatprep.subr.mxu0 %v885
  %953 = vmatpush1.msra.mxu0 %v884
  %954 = vmatprep.subr.mxu0 %v883
  %955 = vmatpush1.msra.mxu0 %v882
  %956 = vmatprep.subr.mxu0 %v881
  %957 = vmatpush1.msra.mxu0 %v880
  %958 = vmatprep.subr.mxu0 %v879
  %959 = vmatpush1.msra.mxu0 %v878
  %960 = vmatprep.subr.mxu0 %v877
  %961 = vmatpush1.msra.mxu0 %v876
  %962 = vmatprep.subr.mxu0 %v875
  %963 = vmatpush1.msra.mxu0 %v874
  %964 = vmatprep.subr.mxu0 %v873
  %965 = vmatpush1.msra.mxu0 %v872
  %966 = vmatprep.subr.mxu0 %v871
  %967 = vmatpush1.msra.mxu0 %v870
  %968 = vmatprep.subr.mxu0 0.0
  %969 = vmatpush2.msra.mxu0 0.0
  %970 = vmatprep.subr.mxu0 0.0
  %971 = vmatpush2.msra.mxu0 0.0
  %972 = vmatprep.subr.mxu0 0.0
  %973 = vmatpush2.msra.mxu0 0.0
  %974 = vmatprep.subr.mxu0 0.0
  %975 = vmatpush2.msra.mxu0 0.0
  %976 = vmatprep.subr.mxu0 0.0
  %977 = vmatpush2.msra.mxu0 0.0
  %978 = vmatprep.subr.mxu0 0.0
  %979 = vmatpush2.msra.mxu0 0.0
  %980 = vmatprep.subr.mxu0 0.0
  %981 = vmatpush2.msra.mxu0 0.0
  %982 = vmatprep.subr.mxu0 0.0
  %983 = vmatpush2.msra.mxu0 0.0
  %984 = vmatprep.subr.mxu0 0.0
  %985 = vmatpush2.msra.mxu0 0.0
  %986 = vmatprep.subr.mxu0 0.0
  %987 = vmatpush2.msra.mxu0 0.0
  %988 = vmatprep.subr.mxu0 0.0
  %989 = vmatpush2.msra.mxu0 0.0
  %990 = vmatprep.subr.mxu0 0.0
  %991 = vmatpush2.msra.mxu0 0.0
  %992 = vmatprep.subr.mxu0 %v909
  %993 = vmatpush2.msra.mxu0 %v908
  %994 = vmatprep.subr.mxu0 %v907
  %995 = vmatpush2.msra.mxu0 %v906
  %996 = vmatprep.subr.mxu0 %v905
  %997 = vmatpush2.msra.mxu0 %v904
  %998 = vmatprep.subr.mxu0 %v903
  %999 = vmatpush2.msra.mxu0 %v902
  %1000 = vmatprep.mubr.f32.mxu0 %v930
  %1001 = vmatmul.mubr.f32.gmra.mxu0 %v918
  %v1002 = vpop.f32.mrf.mxu0
  %v1003 = vadd.f32 0.0, %v1002
  %v1004 = vpop.f32.mrf.mxu0
  %v1005 = vadd.f32 0.0, %v1004
  %1006 = vmatprep.mubr.f32.mxu0 %v932
  %1007 = vmatmul.mubr.f32.gmra.mxu0 %v923
  %v1008 = vpop.f32.mrf.mxu0
  %v1009 = vadd.f32 0.0, %v1008
  %v1010 = vpop.f32.mrf.mxu0
  %v1011 = vadd.f32 0.0, %v1010
  %1012 = vmatprep.mubr.f32.mxu0 %v934
  %1013 = vmatmul.mubr.f32.gmra.mxu0 %v922
  %v1014 = vpop.f32.mrf.mxu0
  %v1015 = vadd.f32 0.0, %v1014
  %v1016 = vpop.f32.mrf.mxu0
  %v1017 = vadd.f32 0.0, %v1016
  %1018 = vdwg.mxu0
  %v1019 = vsel %vm929, %v824, 0
  %v1021 = vsel %vm929, %v826, 0
  %v1023 = vsel %vm929, %v828, 0
  %1025 = vmatprep.subr.mxu0 %v860
  %1026 = vmatpush1.msra.mxu0 %v859
  %1027 = vmatprep.subr.mxu0 %v858
  %1028 = vmatpush1.msra.mxu0 %v857
  %1029 = vmatprep.subr.mxu0 %v856
  %1030 = vmatpush1.msra.mxu0 %v855
  %1031 = vmatprep.subr.mxu0 %v854
  %1032 = vmatpush1.msra.mxu0 %v853
  %1033 = vmatprep.subr.mxu0 %v852
  %1034 = vmatpush1.msra.mxu0 %v851
  %1035 = vmatprep.subr.mxu0 %v850
  %1036 = vmatpush1.msra.mxu0 %v849
  %1037 = vmatprep.subr.mxu0 %v848
  %1038 = vmatpush1.msra.mxu0 %v847
  %1039 = vmatprep.subr.mxu0 %v846
  %1040 = vmatpush1.msra.mxu0 %v845
  %1041 = vmatprep.subr.mxu0 %v844
  %1042 = vmatpush1.msra.mxu0 %v843
  %1043 = vmatprep.subr.mxu0 %v842
  %1044 = vmatpush1.msra.mxu0 %v841
  %1045 = vmatprep.subr.mxu0 %v840
  %1046 = vmatpush1.msra.mxu0 %v839
  %1047 = vmatprep.subr.mxu0 %v838
  %1048 = vmatpush1.msra.mxu0 %v837
  %1049 = vmatprep.subr.mxu0 %v836
  %1050 = vmatpush1.msra.mxu0 %v835
  %1051 = vmatprep.subr.mxu0 %v834
  %1052 = vmatpush1.msra.mxu0 %v833
  %1053 = vmatprep.subr.mxu0 %v832
  %1054 = vmatpush1.msra.mxu0 %v831
  %1055 = vmatprep.subr.mxu0 %v830
  %1056 = vmatpush1.msra.mxu0 %v829
  %1057 = vmatprep.subr.mxu0 0.0
  %1058 = vmatpush2.msra.mxu0 0.0
  %1059 = vmatprep.subr.mxu0 0.0
  %1060 = vmatpush2.msra.mxu0 0.0
  %1061 = vmatprep.subr.mxu0 0.0
  %1062 = vmatpush2.msra.mxu0 0.0
  %1063 = vmatprep.subr.mxu0 0.0
  %1064 = vmatpush2.msra.mxu0 0.0
  %1065 = vmatprep.subr.mxu0 0.0
  %1066 = vmatpush2.msra.mxu0 0.0
  %1067 = vmatprep.subr.mxu0 0.0
  %1068 = vmatpush2.msra.mxu0 0.0
  %1069 = vmatprep.subr.mxu0 0.0
  %1070 = vmatpush2.msra.mxu0 0.0
  %1071 = vmatprep.subr.mxu0 0.0
  %1072 = vmatpush2.msra.mxu0 0.0
  %1073 = vmatprep.subr.mxu0 0.0
  %1074 = vmatpush2.msra.mxu0 0.0
  %1075 = vmatprep.subr.mxu0 0.0
  %1076 = vmatpush2.msra.mxu0 0.0
  %1077 = vmatprep.subr.mxu0 0.0
  %1078 = vmatpush2.msra.mxu0 0.0
  %1079 = vmatprep.subr.mxu0 0.0
  %1080 = vmatpush2.msra.mxu0 0.0
  %1081 = vmatprep.subr.mxu0 %v868
  %1082 = vmatpush2.msra.mxu0 %v867
  %1083 = vmatprep.subr.mxu0 %v866
  %1084 = vmatpush2.msra.mxu0 %v865
  %1085 = vmatprep.subr.mxu0 %v864
  %1086 = vmatpush2.msra.mxu0 %v863
  %1087 = vmatprep.subr.mxu0 %v862
  %1088 = vmatpush2.msra.mxu0 %v861
  %1089 = vmatprep.mubr.f32.mxu0 %v1019
  %1090 = vmatmul.mubr.f32.gmra.mxu0 %v823
  %v1091 = vpop.f32.mrf.mxu0
  %v1092 = vadd.f32 %v1003, %v1091
  %v1093 = vpop.f32.mrf.mxu0
  %v1094 = vadd.f32 %v1005, %v1093
  %1095 = vmatprep.mubr.f32.mxu0 %v1021
  %1096 = vmatmul.mubr.f32.gmra.mxu0 %v825
  %v1097 = vpop.f32.mrf.mxu0
  %v1098 = vadd.f32 %v1009, %v1097
  %v1099 = vpop.f32.mrf.mxu0
  %v1100 = vadd.f32 %v1011, %v1099
  %1101 = vmatprep.mubr.f32.mxu0 %v1023
  %1102 = vmatmul.mubr.f32.gmra.mxu0 %v827
  %v1103 = vpop.f32.mrf.mxu0
  %v1104 = vadd.f32 %v1015, %v1103
  %v1105 = vpop.f32.mrf.mxu0
  %v1106 = vadd.f32 %v1017, %v1105
  %1107 = vdwg.mxu0
  %s1108 = scalar_lea.vmem %s2, 640
  %v1109 = vld [vmem:[%s1108] sm:$0xff]
  %v1110 = vld [vmem:[%s1108 + $0x8] sm:$0xff]
  %v1111 = vld [vmem:[%s1108 + $0x10] sm:$0xff]
  %v1112 = vld [vmem:[%s1108 + $0x18] sm:$0xff]
  %v1113 = vld [vmem:[%s1108 + $0x20] sm:$0xff]
  %v1114 = vld [vmem:[%s1108 + $0x28] sm:$0xff]
  %v1115 = vld [vmem:[%s1108 + $0x30] sm:$0xff]
  %v1116 = vld [vmem:[%s1108 + $0x38] sm:$0xff]
  %v1117 = vld [vmem:[%s1108 + $0x40] sm:$0xff]
  %v1118 = vld [vmem:[%s1108 + $0x48] sm:$0xff]
  %v1119 = vld [vmem:[%s1108 + $0x50] sm:$0xff]
  %v1120 = vld [vmem:[%s1108 + $0x58] sm:$0xff]
  %v1121 = vld [vmem:[%s1108 + $0x60] sm:$0xff]
  %v1122 = vld [vmem:[%s1108 + $0x68] sm:$0xff]
  %v1123 = vld [vmem:[%s1108 + $0x70] sm:$0xff]
  %v1124 = vld [vmem:[%s1108 + $0x78] sm:$0xff]
  %v1125 = vld [vmem:[%s1108 + $0x80] sm:$0xff]
  %v1126 = vld [vmem:[%s1108 + $0x88] sm:$0xff]
  %v1127 = vld [vmem:[%s1108 + $0x90] sm:$0xff]
  %v1128 = vld [vmem:[%s1108 + $0x98] sm:$0xff]
  %v1129 = vld [vmem:[%s1108 + $0xa0] sm:$0xff]
  %v1130 = vld [vmem:[%s1108 + $0xa8] sm:$0xff]
  %v1131 = vld [vmem:[%s1108 + $0xb0] sm:$0xff]
  %v1132 = vld [vmem:[%s1108 + $0xb8] sm:$0xff]
  %v1133 = vld [vmem:[%s1108 + $0xc0] sm:$0xff]
  %v1134 = vld [vmem:[%s1108 + $0xc8] sm:$0xff]
  %v1135 = vld [vmem:[%s1108 + $0xd0] sm:$0xff]
  %v1136 = vld [vmem:[%s1108 + $0xd8] sm:$0xff]
  %v1137 = vld [vmem:[%s1108 + $0xe0] sm:$0xff]
  %v1138 = vld [vmem:[%s1108 + $0xe8] sm:$0xff]
  %v1139 = vld [vmem:[%s1108 + $0xf0] sm:$0xff]
  %v1140 = vld [vmem:[%s1108 + $0xf8] sm:$0xff]
  %v1141 = vld [vmem:[%s1108 + $0x100] sm:$0xff]
  %v1142 = vld [vmem:[%s1108 + $0x108] sm:$0xff]
  %v1143 = vld [vmem:[%s1108 + $0x110] sm:$0xff]
  %v1144 = vld [vmem:[%s1108 + $0x118] sm:$0xff]
  %v1145 = vld [vmem:[%s1108 + $0x120] sm:$0xff]
  %v1146 = vld [vmem:[%s1108 + $0x128] sm:$0xff]
  %v1147 = vld [vmem:[%s1108 + $0x130] sm:$0xff]
  %v1148 = vld [vmem:[%s1108 + $0x138] sm:$0xff]
  %v1149 = vrot.slane %v823, 2
  %v1150 = vrot.slane %v825, 2
  %v1151 = vsel %vm254, %v1149, %v1150
  %v1152 = vrot.slane %v824, 2
  %v1153 = vrot.slane %v826, 2
  %v1154 = vsel %vm254, %v1152, %v1153
  %v1155 = vrot.slane %v827, 2
  %v1156 = vsel %vm254, %v1150, %v1155
  %v1157 = vrot.slane %v828, 2
  %v1158 = vsel %vm254, %v1153, %v1157
  %v1162 = vsel %vm929, %v1154, 0
  %v1164 = vsel %vm929, %v1158, 0
  %v1166 = vsel %vm929, %v1157, 0
  %1168 = vmatprep.subr.mxu0 %v1140
  %1169 = vmatpush1.msra.mxu0 %v1139
  %1170 = vmatprep.subr.mxu0 %v1138
  %1171 = vmatpush1.msra.mxu0 %v1137
  %1172 = vmatprep.subr.mxu0 %v1136
  %1173 = vmatpush1.msra.mxu0 %v1135
  %1174 = vmatprep.subr.mxu0 %v1134
  %1175 = vmatpush1.msra.mxu0 %v1133
  %1176 = vmatprep.subr.mxu0 %v1132
  %1177 = vmatpush1.msra.mxu0 %v1131
  %1178 = vmatprep.subr.mxu0 %v1130
  %1179 = vmatpush1.msra.mxu0 %v1129
  %1180 = vmatprep.subr.mxu0 %v1128
  %1181 = vmatpush1.msra.mxu0 %v1127
  %1182 = vmatprep.subr.mxu0 %v1126
  %1183 = vmatpush1.msra.mxu0 %v1125
  %1184 = vmatprep.subr.mxu0 %v1124
  %1185 = vmatpush1.msra.mxu0 %v1123
  %1186 = vmatprep.subr.mxu0 %v1122
  %1187 = vmatpush1.msra.mxu0 %v1121
  %1188 = vmatprep.subr.mxu0 %v1120
  %1189 = vmatpush1.msra.mxu0 %v1119
  %1190 = vmatprep.subr.mxu0 %v1118
  %1191 = vmatpush1.msra.mxu0 %v1117
  %1192 = vmatprep.subr.mxu0 %v1116
  %1193 = vmatpush1.msra.mxu0 %v1115
  %1194 = vmatprep.subr.mxu0 %v1114
  %1195 = vmatpush1.msra.mxu0 %v1113
  %1196 = vmatprep.subr.mxu0 %v1112
  %1197 = vmatpush1.msra.mxu0 %v1111
  %1198 = vmatprep.subr.mxu0 %v1110
  %1199 = vmatpush1.msra.mxu0 %v1109
  %1200 = vmatprep.subr.mxu0 0.0
  %1201 = vmatpush2.msra.mxu0 0.0
  %1202 = vmatprep.subr.mxu0 0.0
  %1203 = vmatpush2.msra.mxu0 0.0
  %1204 = vmatprep.subr.mxu0 0.0
  %1205 = vmatpush2.msra.mxu0 0.0
  %1206 = vmatprep.subr.mxu0 0.0
  %1207 = vmatpush2.msra.mxu0 0.0
  %1208 = vmatprep.subr.mxu0 0.0
  %1209 = vmatpush2.msra.mxu0 0.0
  %1210 = vmatprep.subr.mxu0 0.0
  %1211 = vmatpush2.msra.mxu0 0.0
  %1212 = vmatprep.subr.mxu0 0.0
  %1213 = vmatpush2.msra.mxu0 0.0
  %1214 = vmatprep.subr.mxu0 0.0
  %1215 = vmatpush2.msra.mxu0 0.0
  %1216 = vmatprep.subr.mxu0 0.0
  %1217 = vmatpush2.msra.mxu0 0.0
  %1218 = vmatprep.subr.mxu0 0.0
  %1219 = vmatpush2.msra.mxu0 0.0
  %1220 = vmatprep.subr.mxu0 0.0
  %1221 = vmatpush2.msra.mxu0 0.0
  %1222 = vmatprep.subr.mxu0 0.0
  %1223 = vmatpush2.msra.mxu0 0.0
  %1224 = vmatprep.subr.mxu0 %v1148
  %1225 = vmatpush2.msra.mxu0 %v1147
  %1226 = vmatprep.subr.mxu0 %v1146
  %1227 = vmatpush2.msra.mxu0 %v1145
  %1228 = vmatprep.subr.mxu0 %v1144
  %1229 = vmatpush2.msra.mxu0 %v1143
  %1230 = vmatprep.subr.mxu0 %v1142
  %1231 = vmatpush2.msra.mxu0 %v1141
  %1232 = vmatprep.mubr.f32.mxu0 %v1162
  %1233 = vmatmul.mubr.f32.gmra.mxu0 %v1151
  %v1234 = vpop.f32.mrf.mxu0
  %v1235 = vadd.f32 0.0, %v1234
  %v1236 = vpop.f32.mrf.mxu0
  %v1237 = vadd.f32 0.0, %v1236
  %1238 = vmatprep.mubr.f32.mxu0 %v1164
  %1239 = vmatmul.mubr.f32.gmra.mxu0 %v1156
  %v1240 = vpop.f32.mrf.mxu0
  %v1241 = vadd.f32 0.0, %v1240
  %v1242 = vpop.f32.mrf.mxu0
  %v1243 = vadd.f32 0.0, %v1242
  %1244 = vmatprep.mubr.f32.mxu0 %v1166
  %1245 = vmatmul.mubr.f32.gmra.mxu0 %v1155
  %v1246 = vpop.f32.mrf.mxu0
  %v1247 = vadd.f32 0.0, %v1246
  %v1248 = vpop.f32.mrf.mxu0
  %v1249 = vadd.f32 0.0, %v1248
  %1250 = vdwg.mxu0
  %v1251 = vadd.f32 %v1092, %v1235
  %v1252 = vadd.f32 %v1094, %v1237
  %v1253 = vadd.f32 %v1098, %v1241
  %v1254 = vadd.f32 %v1100, %v1243
  %v1255 = vadd.f32 %v1104, %v1247
  %v1256 = vadd.f32 %v1106, %v1249
  %v1257 = vld [vmem:[%s3] sm:$0xff]
  %v1258 = vld [vmem:[%s3 + $0x8] sm:$0xff]
  %v1259 = vld [vmem:[%s3 + $0x10] sm:$0xff]
  %v1260 = vld [vmem:[%s3 + $0x18] sm:$0xff]
  %v1261 = vld [vmem:[%s3 + $0x20] sm:$0xff]
  %v1262 = vld [vmem:[%s3 + $0x28] sm:$0xff]
  %v1263 = vld [vmem:[%s3 + $0x30] sm:$0xff]
  %v1264 = vld [vmem:[%s3 + $0x38] sm:$0xff]
  %v1265 = vld [vmem:[%s3 + $0x40] sm:$0xff]
  %v1266 = vld [vmem:[%s3 + $0x48] sm:$0xff]
  %v1267 = vld [vmem:[%s3 + $0x50] sm:$0xff]
  %v1268 = vld [vmem:[%s3 + $0x58] sm:$0xff]
  %v1269 = vld [vmem:[%s3 + $0x60] sm:$0xff]
  %v1270 = vld [vmem:[%s3 + $0x68] sm:$0xff]
  %v1271 = vld [vmem:[%s3 + $0x70] sm:$0xff]
  %v1272 = vld [vmem:[%s3 + $0x78] sm:$0xff]
  %v1273 = vld [vmem:[%s3 + $0x80] sm:$0xff]
  %v1274 = vld [vmem:[%s3 + $0x88] sm:$0xff]
  %v1275 = vld [vmem:[%s3 + $0x90] sm:$0xff]
  %v1276 = vld [vmem:[%s3 + $0x98] sm:$0xff]
  %v1277 = vld [vmem:[%s3 + $0xa0] sm:$0xff]
  %v1278 = vld [vmem:[%s3 + $0xa8] sm:$0xff]
  %v1279 = vld [vmem:[%s3 + $0xb0] sm:$0xff]
  %v1280 = vld [vmem:[%s3 + $0xb8] sm:$0xff]
  %v1281 = vld [vmem:[%s3 + $0xc0] sm:$0xff]
  %v1282 = vld [vmem:[%s3 + $0xc8] sm:$0xff]
  %v1283 = vld [vmem:[%s3 + $0xd0] sm:$0xff]
  %v1284 = vld [vmem:[%s3 + $0xd8] sm:$0xff]
  %v1285 = vld [vmem:[%s3 + $0xe0] sm:$0xff]
  %v1286 = vld [vmem:[%s3 + $0xe8] sm:$0xff]
  %v1287 = vld [vmem:[%s3 + $0xf0] sm:$0xff]
  %v1288 = vld [vmem:[%s3 + $0xf8] sm:$0xff]
  %v1289 = vld [vmem:[%s3 + $0x100] sm:$0xff]
  %v1290 = vld [vmem:[%s3 + $0x108] sm:$0xff]
  %v1291 = vld [vmem:[%s3 + $0x110] sm:$0xff]
  %v1292 = vld [vmem:[%s3 + $0x118] sm:$0xff]
  %vm1293 = vcmask 130048
  %v1295 = vsel %vm1293, %v1252, 0
  %v1298 = vsel %vm1293, %v1254, 0
  %v1301 = vsel %vm1293, %v1256, 0
  %1303 = vmatprep.subr.mxu0 %v1288
  %1304 = vmatpush1.msra.mxu0 %v1287
  %1305 = vmatprep.subr.mxu0 %v1286
  %1306 = vmatpush1.msra.mxu0 %v1285
  %1307 = vmatprep.subr.mxu0 %v1284
  %1308 = vmatpush1.msra.mxu0 %v1283
  %1309 = vmatprep.subr.mxu0 %v1282
  %1310 = vmatpush1.msra.mxu0 %v1281
  %1311 = vmatprep.subr.mxu0 %v1280
  %1312 = vmatpush1.msra.mxu0 %v1279
  %1313 = vmatprep.subr.mxu0 %v1278
  %1314 = vmatpush1.msra.mxu0 %v1277
  %1315 = vmatprep.subr.mxu0 %v1276
  %1316 = vmatpush1.msra.mxu0 %v1275
  %1317 = vmatprep.subr.mxu0 %v1274
  %1318 = vmatpush1.msra.mxu0 %v1273
  %1319 = vmatprep.subr.mxu0 %v1272
  %1320 = vmatpush1.msra.mxu0 %v1271
  %1321 = vmatprep.subr.mxu0 %v1270
  %1322 = vmatpush1.msra.mxu0 %v1269
  %1323 = vmatprep.subr.mxu0 %v1268
  %1324 = vmatpush1.msra.mxu0 %v1267
  %1325 = vmatprep.subr.mxu0 %v1266
  %1326 = vmatpush1.msra.mxu0 %v1265
  %1327 = vmatprep.subr.mxu0 %v1264
  %1328 = vmatpush1.msra.mxu0 %v1263
  %1329 = vmatprep.subr.mxu0 %v1262
  %1330 = vmatpush1.msra.mxu0 %v1261
  %1331 = vmatprep.subr.mxu0 %v1260
  %1332 = vmatpush1.msra.mxu0 %v1259
  %1333 = vmatprep.subr.mxu0 %v1258
  %1334 = vmatpush1.msra.mxu0 %v1257
  %1335 = vmatprep.subr.mxu0 0.0
  %1336 = vmatpush2.msra.mxu0 0.0
  %1337 = vmatprep.subr.mxu0 0.0
  %1338 = vmatpush2.msra.mxu0 0.0
  %1339 = vmatprep.subr.mxu0 0.0
  %1340 = vmatpush2.msra.mxu0 0.0
  %1341 = vmatprep.subr.mxu0 0.0
  %1342 = vmatpush2.msra.mxu0 0.0
  %1343 = vmatprep.subr.mxu0 0.0
  %1344 = vmatpush2.msra.mxu0 0.0
  %1345 = vmatprep.subr.mxu0 0.0
  %1346 = vmatpush2.msra.mxu0 0.0
  %1347 = vmatprep.subr.mxu0 0.0
  %1348 = vmatpush2.msra.mxu0 0.0
  %1349 = vmatprep.subr.mxu0 0.0
  %1350 = vmatpush2.msra.mxu0 0.0
  %1351 = vmatprep.subr.mxu0 0.0
  %1352 = vmatpush2.msra.mxu0 0.0
  %1353 = vmatprep.subr.mxu0 0.0
  %1354 = vmatpush2.msra.mxu0 0.0
  %1355 = vmatprep.subr.mxu0 0.0
  %1356 = vmatpush2.msra.mxu0 0.0
  %1357 = vmatprep.subr.mxu0 0.0
  %1358 = vmatpush2.msra.mxu0 0.0
  %1359 = vmatprep.subr.mxu0 0.0
  %1360 = vmatpush2.msra.mxu0 0.0
  %1361 = vmatprep.subr.mxu0 0.0
  %1362 = vmatpush2.msra.mxu0 0.0
  %1363 = vmatprep.subr.mxu0 %v1292
  %1364 = vmatpush2.msra.mxu0 %v1291
  %1365 = vmatprep.subr.mxu0 %v1290
  %1366 = vmatpush2.msra.mxu0 %v1289
  %1367 = vmatprep.mubr.f32.mxu0 %v1295
  %1368 = vmatmul.mubr.f32.gmra.mxu0 %v1251
  %v1369 = vpop.f32.mrf.mxu0
  %v1370 = vadd.f32 0.0, %v1369
  %v1371 = vpop.f32.mrf.mxu0
  %v1372 = vadd.f32 0.0, %v1371
  %1373 = vmatprep.mubr.f32.mxu0 %v1298
  %1374 = vmatmul.mubr.f32.gmra.mxu0 %v1253
  %v1375 = vpop.f32.mrf.mxu0
  %v1376 = vadd.f32 0.0, %v1375
  %v1377 = vpop.f32.mrf.mxu0
  %v1378 = vadd.f32 0.0, %v1377
  %1379 = vmatprep.mubr.f32.mxu0 %v1301
  %1380 = vmatmul.mubr.f32.gmra.mxu0 %v1255
  %v1381 = vpop.f32.mrf.mxu0
  %v1382 = vadd.f32 0.0, %v1381
  %v1383 = vpop.f32.mrf.mxu0
  %v1384 = vadd.f32 0.0, %v1383
  %1385 = vdwg.mxu0
  %v1386 = vld [vmem:[%s4] sm:$0xff]
  %v1387 = vld [vmem:[%s4 + $0x8] sm:$0xff]
  %v1388 = vld [vmem:[%s4 + $0x10] sm:$0xff]
  %v1389 = vld [vmem:[%s4 + $0x18] sm:$0xff]
  %v1390 = vld [vmem:[%s4 + $0x20] sm:$0xff]
  %v1391 = vld [vmem:[%s4 + $0x28] sm:$0xff]
  %v1392 = vld [vmem:[%s4 + $0x30] sm:$0xff]
  %v1393 = vld [vmem:[%s4 + $0x38] sm:$0xff]
  %v1394 = vld [vmem:[%s4 + $0x40] sm:$0xff]
  %v1395 = vld [vmem:[%s4 + $0x48] sm:$0xff]
  %v1396 = vld [vmem:[%s4 + $0x50] sm:$0xff]
  %v1397 = vld [vmem:[%s4 + $0x58] sm:$0xff]
  %v1398 = vld [vmem:[%s4 + $0x60] sm:$0xff]
  %v1399 = vld [vmem:[%s4 + $0x68] sm:$0xff]
  %v1400 = vld [vmem:[%s4 + $0x70] sm:$0xff]
  %v1401 = vld [vmem:[%s4 + $0x78] sm:$0xff]
  %v1402 = vld [vmem:[%s4 + $0x80] sm:$0xff]
  %v1403 = vld [vmem:[%s4 + $0x88] sm:$0xff]
  %v1405 = vsel %vm1293, %v1372, 0
  %v1408 = vsel %vm1293, %v1378, 0
  %v1411 = vsel %vm1293, %v1384, 0
  %1413 = vmatprep.subr.mxu0 0.0
  %1414 = vmatpush1.msra.mxu0 %v1401
  %1415 = vmatprep.subr.mxu0 0.0
  %1416 = vmatpush1.msra.mxu0 %v1400
  %1417 = vmatprep.subr.mxu0 0.0
  %1418 = vmatpush1.msra.mxu0 %v1399
  %1419 = vmatprep.subr.mxu0 0.0
  %1420 = vmatpush1.msra.mxu0 %v1398
  %1421 = vmatprep.subr.mxu0 0.0
  %1422 = vmatpush1.msra.mxu0 %v1397
  %1423 = vmatprep.subr.mxu0 0.0
  %1424 = vmatpush1.msra.mxu0 %v1396
  %1425 = vmatprep.subr.mxu0 0.0
  %1426 = vmatpush1.msra.mxu0 %v1395
  %1427 = vmatprep.subr.mxu0 0.0
  %1428 = vmatpush1.msra.mxu0 %v1394
  %1429 = vmatprep.subr.mxu0 0.0
  %1430 = vmatpush1.msra.mxu0 %v1393
  %1431 = vmatprep.subr.mxu0 0.0
  %1432 = vmatpush1.msra.mxu0 %v1392
  %1433 = vmatprep.subr.mxu0 0.0
  %1434 = vmatpush1.msra.mxu0 %v1391
  %1435 = vmatprep.subr.mxu0 0.0
  %1436 = vmatpush1.msra.mxu0 %v1390
  %1437 = vmatprep.subr.mxu0 0.0
  %1438 = vmatpush1.msra.mxu0 %v1389
  %1439 = vmatprep.subr.mxu0 0.0
  %1440 = vmatpush1.msra.mxu0 %v1388
  %1441 = vmatprep.subr.mxu0 0.0
  %1442 = vmatpush1.msra.mxu0 %v1387
  %1443 = vmatprep.subr.mxu0 0.0
  %1444 = vmatpush1.msra.mxu0 %v1386
  %1445 = vmatprep.subr.mxu0 0.0
  %1446 = vmatpush2.msra.mxu0 0.0
  %1447 = vmatprep.subr.mxu0 0.0
  %1448 = vmatpush2.msra.mxu0 0.0
  %1449 = vmatprep.subr.mxu0 0.0
  %1450 = vmatpush2.msra.mxu0 0.0
  %1451 = vmatprep.subr.mxu0 0.0
  %1452 = vmatpush2.msra.mxu0 0.0
  %1453 = vmatprep.subr.mxu0 0.0
  %1454 = vmatpush2.msra.mxu0 0.0
  %1455 = vmatprep.subr.mxu0 0.0
  %1456 = vmatpush2.msra.mxu0 0.0
  %1457 = vmatprep.subr.mxu0 0.0
  %1458 = vmatpush2.msra.mxu0 0.0
  %1459 = vmatprep.subr.mxu0 0.0
  %1460 = vmatpush2.msra.mxu0 0.0
  %1461 = vmatprep.subr.mxu0 0.0
  %1462 = vmatpush2.msra.mxu0 0.0
  %1463 = vmatprep.subr.mxu0 0.0
  %1464 = vmatpush2.msra.mxu0 0.0
  %1465 = vmatprep.subr.mxu0 0.0
  %1466 = vmatpush2.msra.mxu0 0.0
  %1467 = vmatprep.subr.mxu0 0.0
  %1468 = vmatpush2.msra.mxu0 0.0
  %1469 = vmatprep.subr.mxu0 0.0
  %1470 = vmatpush2.msra.mxu0 0.0
  %1471 = vmatprep.subr.mxu0 0.0
  %1472 = vmatpush2.msra.mxu0 0.0
  %1473 = vmatprep.subr.mxu0 0.0
  %1474 = vmatpush2.msra.mxu0 %v1403
  %1475 = vmatprep.subr.mxu0 0.0
  %1476 = vmatpush2.msra.mxu0 %v1402
  %1477 = vmatprep.mubr.f32.mxu0 %v1405
  %1478 = vmatmul.mubr.f32.gmra.mxu0 %v1370
  %v1479 = vpop.f32.mrf.mxu0
  %v1480 = vadd.f32 0.0, %v1479
  %v1481 = vpop.f32.mrf.mxu0
  %1482 = vmatprep.mubr.f32.mxu0 %v1408
  %1483 = vmatmul.mubr.f32.gmra.mxu0 %v1376
  %v1484 = vpop.f32.mrf.mxu0
  %v1485 = vadd.f32 0.0, %v1484
  %v1486 = vpop.f32.mrf.mxu0
  %1487 = vmatprep.mubr.f32.mxu0 %v1411
  %1488 = vmatmul.mubr.f32.gmra.mxu0 %v1382
  %v1489 = vpop.f32.mrf.mxu0
  %v1490 = vadd.f32 0.0, %v1489
  %v1491 = vpop.f32.mrf.mxu0
  %1492 = vdwg.mxu0
  %v1493 = vld [vmem:[%s5] sm:$0xff]
  %v1494 = vld [vmem:[%s5 + $0x8] sm:$0x1]
  %vm1495 = vcmask 146432
  %v1497 = vsel %vm1495, %v1493, 0
  %v1500 = vsel %vm1495, %v1494, 0
  %v1503 = vsel %vm60, %v1490, 0
  %1505 = vmatprep.subr.mxu0 0.0
  %1506 = vmatpush1.msra.mxu0 0.0
  %1507 = vmatprep.subr.mxu0 0.0
  %1508 = vmatpush1.msra.mxu0 0.0
  %1509 = vmatprep.subr.mxu0 0.0
  %1510 = vmatpush1.msra.mxu0 0.0
  %1511 = vmatprep.subr.mxu0 0.0
  %1512 = vmatpush1.msra.mxu0 0.0
  %1513 = vmatprep.subr.mxu0 0.0
  %1514 = vmatpush1.msra.mxu0 0.0
  %1515 = vmatprep.subr.mxu0 0.0
  %1516 = vmatpush1.msra.mxu0 0.0
  %1517 = vmatprep.subr.mxu0 0.0
  %1518 = vmatpush1.msra.mxu0 0.0
  %1519 = vmatprep.subr.mxu0 0.0
  %1520 = vmatpush1.msra.mxu0 0.0
  %1521 = vmatprep.subr.mxu0 0.0
  %1522 = vmatpush1.msra.mxu0 0.0
  %1523 = vmatprep.subr.mxu0 0.0
  %1524 = vmatpush1.msra.mxu0 0.0
  %1525 = vmatprep.subr.mxu0 0.0
  %1526 = vmatpush1.msra.mxu0 0.0
  %1527 = vmatprep.subr.mxu0 0.0
  %1528 = vmatpush1.msra.mxu0 0.0
  %1529 = vmatprep.subr.mxu0 0.0
  %1530 = vmatpush1.msra.mxu0 0.0
  %1531 = vmatprep.subr.mxu0 0.0
  %1532 = vmatpush1.msra.mxu0 %v1503
  %1533 = vmatprep.subr.mxu0 0.0
  %1534 = vmatpush1.msra.mxu0 %v1485
  %1535 = vmatprep.subr.mxu0 0.0
  %1536 = vmatpush1.msra.mxu0 %v1480
  %1537 = vmatprep.subr.mxu0 0.0
  %1538 = vmatpush2.msra.mxu0 0.0
  %1539 = vmatprep.subr.mxu0 0.0
  %1540 = vmatpush2.msra.mxu0 0.0
  %1541 = vmatprep.subr.mxu0 0.0
  %1542 = vmatpush2.msra.mxu0 0.0
  %1543 = vmatprep.subr.mxu0 0.0
  %1544 = vmatpush2.msra.mxu0 0.0
  %1545 = vmatprep.subr.mxu0 0.0
  %1546 = vmatpush2.msra.mxu0 0.0
  %1547 = vmatprep.subr.mxu0 0.0
  %1548 = vmatpush2.msra.mxu0 0.0
  %1549 = vmatprep.subr.mxu0 0.0
  %1550 = vmatpush2.msra.mxu0 0.0
  %1551 = vmatprep.subr.mxu0 0.0
  %1552 = vmatpush2.msra.mxu0 0.0
  %1553 = vmatprep.subr.mxu0 0.0
  %1554 = vmatpush2.msra.mxu0 0.0
  %1555 = vmatprep.subr.mxu0 0.0
  %1556 = vmatpush2.msra.mxu0 0.0
  %1557 = vmatprep.subr.mxu0 0.0
  %1558 = vmatpush2.msra.mxu0 0.0
  %1559 = vmatprep.subr.mxu0 0.0
  %1560 = vmatpush2.msra.mxu0 0.0
  %1561 = vmatprep.subr.mxu0 0.0
  %1562 = vmatpush2.msra.mxu0 0.0
  %1563 = vmatprep.subr.mxu0 0.0
  %1564 = vmatpush2.msra.mxu0 0.0
  %1565 = vmatprep.subr.mxu0 0.0
  %1566 = vmatpush2.msra.mxu0 0.0
  %1567 = vmatprep.subr.mxu0 0.0
  %1568 = vmatpush2.msra.mxu0 0.0
  %1569 = vmatprep.mubr.f32.mxu0 0.0
  %1570 = vmatmul.mubr.f32.gmra.mxu0 %v1497
  %v1571 = vpop.f32.mrf.mxu0
  %v1572 = vadd.f32 0.0, %v1571
  %v1573 = vpop.f32.mrf.mxu0
  %1574 = vmatprep.mubr.f32.mxu0 0.0
  %1575 = vmatmul.mubr.f32.gmra.mxu0 %v1500
  %v1576 = vpop.f32.mrf.mxu0
  %v1577 = vadd.f32 0.0, %v1576
  %v1578 = vpop.f32.mrf.mxu0
  %1579 = vdwg.mxu0
  %vm1580 = vcmask 72704
  %1581 = vst.msk [vmem:[%s6] sm:$0xff] %vm1580, %v1572
  %vm1582 = vcmask 65536
  %1583 = vst.msk [vmem:[%s6 + $0x8] sm:$0x1] %vm1582, %v1577
  // Predicated region
  $region26: #{_lambda_.1} parent=0 // pred_check
    _
  $region27: #{_lambda_.1} parent=0 // pred_check_branch
    %1585 = sbr.rel (0) target = $region29
  $region28: #{_lambda_.1} parent=0 // pred_region
    _
  $region29: #{_lambda_.1} parent=0 // pred_fallthru
    _
  // Predicated region
  $region30: #{_lambda_.1} parent=0 // pred_check
    _
  $region31: #{_lambda_.1} parent=0 // pred_check_branch
    %1587 = sbr.rel (0) target = $region33
  $region32: #{_lambda_.1} parent=0 // pred_region
    _
  $region33: #{_lambda_.1} parent=0 // pred_fallthru
    _

</llo_original>
